<compile_context>
chip_gen: v5e
topology: v5e:2x2
jax: 0.10.0
libtpu: 0.0.40
codegen_flags: <defaults>
</compile_context>

<pallas_src>
import functools

import jax
import jax.numpy as jnp
import numpy as np
from jax.experimental import pallas as pl
from jax.experimental.pallas import tpu as pltpu


# ---------------------------------------------------------------------------
# Fused kernel: per batch element, qkv projection + per-(head,frame) attention.
# ---------------------------------------------------------------------------
def _fused_mhsa_kernel(x_ref, w_ref, pos_ref, o_ref, *, G, Ch):
    """One batch element.

    x_ref  : (C*F, S)       bf16  input with channels/frames flattened row-major
    w_ref  : (3*G*Ch, C*F)  bf16  frame-expanded projection weights, ordered per
                                  group g as [k_g ; scale*q_g ; v_g]
    pos_ref: (G, Ch, S)     f32   relative-position tensor, channel-major
    o_ref  : (G, Ch, S)     f32   output in PyTorch's entangled head-view layout
    """
    S = x_ref.shape[-1]

    # 1x1x1 q/k/v convs + PyTorch's entangled head-view, as one bf16 MXU matmul.
    qkv = jnp.dot(w_ref[...], x_ref[...],
                  preferred_element_type=jnp.float32)          # (3*G*Ch, S) f32
    qkv = qkv.reshape(G, 3 * Ch, S)                            # per-group [k;q;v]
    # Tile-aligned static sublane slices (Ch = 8 rows = exactly one f32 tile).
    kq = qkv[:, 0:2 * Ch, :]          # rhs of the fused energy matmul: [k ; q]
    q = qkv[:, Ch:2 * Ch, :]          # q (already scaled through the weight)
    v = qkv[:, 2 * Ch:3 * Ch, :]

    # Fused energy: energy[s,t] = sum_c q[c,s]k[c,t] + sum_c pos[c,s]q[c,t]
    # (both terms carry the 1/sqrt(Ch) scale via q).  Single K=2*Ch MXU push.
    lhs = jnp.concatenate([q, pos_ref[...]], axis=1)           # (G, 2Ch, S) f32
    energy = jnp.einsum("gcs,gct->gst",
                        lhs.astype(jnp.bfloat16),
                        kq.astype(jnp.bfloat16),
                        preferred_element_type=jnp.float32)    # (G, S, S) f32

    # Softmax over the key axis; elementwise math kept in f32 (v5e-safe),
    # p is cast to bf16 only as an MXU operand.
    m = jnp.max(energy, axis=-1, keepdims=True)
    p = jnp.exp(energy - m)
    p_bf = p.astype(jnp.bfloat16)

    # Unnormalised output AND the softmax denominator out of the same matmul:
    # append a ones-row to v, so result row Ch of each group is sum_k p[q,k].
    v_ext = jnp.concatenate([v, jnp.ones((G, 1, S), jnp.float32)], axis=1)
    out_ext = jnp.einsum("gcs,gqs->gcq",
                         v_ext.astype(jnp.bfloat16), p_bf,
                         preferred_element_type=jnp.float32)   # (G, Ch+1, S) f32

    denom = out_ext[:, Ch:Ch + 1, :]                           # (G, 1, S)
    out = out_ext[:, 0:Ch, :] * pl.reciprocal(denom, approx=True)  # EUP recip
    o_ref[...] = out.astype(o_ref.dtype)


# ---------------------------------------------------------------------------
# Wrapper-side parameter preprocessing (pure functions of the weights).
# ---------------------------------------------------------------------------
def _build_fused_qkv_weight(wq, wk, wv, heads, n_frames, C, scale):
    """Frame-expanded, per-group-interleaved projection weight (bf16).

    Returns W of shape (3*heads*F*Ch, C*F) such that W @ x.reshape(C*F, S)
    yields, for each group g = head*F + frame, the contiguous row block
    [k_g ; scale*q_g ; v_g] (each (Ch, S)) already in PyTorch's entangled
    .view(B, heads, F, Ch, -1) channel order.
    """
    Ch = C // heads
    F = n_frames
    G = heads * F
    GC = G * Ch
    idx = jnp.arange(GC)                 # entangled view row index: g*Ch + ch
    c_out = idx // F                     # conv output channel feeding this row
    f_sel = idx % F                      # frame this row reads
    onehot = jax.nn.one_hot(f_sel, F, dtype=jnp.float32)        # (GC, F)

    def expand(w):                       # (C, C) -> (GC, C*F) frame-expanded
        rows = w[c_out]                                          # (GC, C)
        return (rows[:, :, None] * onehot[:, None, :]).reshape(GC, C * F)

    k_e = expand(wk).reshape(G, Ch, C * F)
    q_e = (expand(wq) * scale).reshape(G, Ch, C * F)             # fold softmax scale
    v_e = expand(wv).reshape(G, Ch, C * F)
    w_all = jnp.concatenate([k_e, q_e, v_e], axis=1)             # (G, 3Ch, C*F)
    return w_all.reshape(3 * GC, C * F).astype(jnp.bfloat16)


def mhsa3d_forward(x, params, heads, *, core_parallel=True):
    B, C, F, H, W = x.shape
    Ch = C // heads
    S = H * W
    G = heads * F
    GC = G * Ch
    CF = C * F
    scale = float(Ch) ** (-0.5)

    # --- weight-only preprocessing (cacheable, fused by XLA under jit) ---
    w_exp = _build_fused_qkv_weight(params["wq"], params["wk"], params["wv"],
                                    heads, F, C, scale)

    # rel_h + rel_w + rel_t -> (1, heads, Ch, F, W, H).  PyTorch flattens the
    # spatial dims in (W, H) order here while x is flattened in (H, W) order;
    # that quirk is reproduced faithfully (matches the torch module / reference).
    # pos kept in f32 so the in-kernel concat with q stays tile-aligned; it is
    # cast to bf16 only as an MXU operand inside the kernel.
    rel = params["rel_h"] + params["rel_w"] + params["rel_t"]
    pos_cs = (rel.reshape(heads, Ch, F, S)
                 .transpose(0, 2, 1, 3)            # (heads, F, Ch, S)
                 .reshape(G, Ch, S)
                 .astype(jnp.float32))

    # x: (B, C, F, H, W) -> (B, C*F, S); free row-major reshape, bf16 for MXU/DMA.
    x_cf = x.reshape(B, CF, S).astype(jnp.bfloat16)

    dim_sem = (pltpu.CORE_PARALLEL,) if core_parallel else ("parallel",)

    kernel = functools.partial(_fused_mhsa_kernel, G=G, Ch=Ch)
    out = pl.pallas_call(
        kernel,
        grid=(B,),
        in_specs=[
            pl.BlockSpec((None, CF, S), lambda b: (b, 0, 0)),      # x slab
            pl.BlockSpec((3 * GC, CF), lambda b: (0, 0)),          # stacked weights
            pl.BlockSpec((G, Ch, S), lambda b: (0, 0, 0)),         # positions
        ],
        out_specs=pl.BlockSpec((None, G, Ch, S), lambda b: (b, 0, 0, 0)),
        out_shape=jax.ShapeDtypeStruct((B, G, Ch, S), x.dtype),
        compiler_params=pltpu.CompilerParams(dimension_semantics=dim_sem),
    )(x_cf, w_exp, pos_cs)

    # (B, G, Ch, S) row-major == PyTorch's (B, heads, F, Ch, S) view
    #                         == (B, C, F, H, W) flat order: free reshape.
    return out.reshape(B, C, F, H, W)


# ---------------------------------------------------------------------------
# Pure-JAX reference (mirrors the torch MHSA3D forward line by line, all f32).
# ---------------------------------------------------------------------------
def mhsa3d_reference(x, params, heads):
    B, C, F, H, W = x.shape
    Ch = C // heads
    scale = float(Ch) ** (-0.5)

    def conv1x1x1(w):
        return jnp.einsum("oc,bcfhw->bofhw", w, x)

    q = conv1x1x1(params["wq"]).reshape(B, heads, F, Ch, -1)
    k = conv1x1x1(params["wk"]).reshape(B, heads, F, Ch, -1)
    v = conv1x1x1(params["wv"]).reshape(B, heads, F, Ch, -1)

    cc = jnp.einsum("bhfcs,bhfct->bhfst", q, k)
    rel = params["rel_h"] + params["rel_w"] + params["rel_t"]
    pos = rel.reshape(1, heads, Ch, F, -1).transpose(0, 1, 3, 4, 2)
    cp = jnp.einsum("zhfsc,bhfct->bhfst", pos, q)
    energy = (cc + cp) * scale
    attn = jax.nn.softmax(energy, axis=-1)
    out = jnp.einsum("bhfcs,bhfts->bhfct", v, attn)
    return out.reshape(B, C, F, H, W)


if __name__ == "__main__":
    B, C, F, H, W = 2, 32, 2, 8, 8     # toy: n_dims=32, n_frames_last_layer=2, 8x8 spatial
    heads = 4
    Ch = C // heads

    key = jax.random.PRNGKey(0)
    keys = jax.random.split(key, 7)
    x = jax.random.normal(keys[0], (B, C, F, H, W), jnp.float32)
    wscale = 1.0 / np.sqrt(C)
    params = dict(
        wq=jax.random.normal(keys[1], (C, C), jnp.float32) * wscale,   # Conv3d (O,C,1,1,1) squeezed
        wk=jax.random.normal(keys[2], (C, C), jnp.float32) * wscale,
        wv=jax.random.normal(keys[3], (C, C), jnp.float32) * wscale,
        rel_h=jax.random.normal(keys[4], (1, heads, Ch, 1, 1, H), jnp.float32),
        rel_w=jax.random.normal(keys[5], (1, heads, Ch, 1, W, 1), jnp.float32),
        rel_t=jax.random.normal(keys[6], (1, heads, Ch, F, 1, 1), jnp.float32),
    )

    def run(core_parallel):
        fwd = jax.jit(functools.partial(mhsa3d_forward, heads=heads,
                                        core_parallel=core_parallel))
        return jax.block_until_ready(fwd(x, params))

    try:
        out = run(True)        # v7x / megacore parts: shard B=2 across TensorCores
    except Exception:
        out = run(False)       # single-TensorCore generations (v5e/v6e)

    ref = mhsa3d_reference(x, params, heads)
    # bf16 MXU operands (perf review item 1) put the worst-case element error
    # around ~1e-2 vs the all-f32 reference (the previous all-f32 kernel passed
    # at 2e-2); softmax elementwise math and accumulation remain f32.
    np.testing.assert_allclose(np.asarray(out), np.asarray(ref), rtol=3e-2, atol=3e-2)

    print("KERNEL_OK")
</pallas_src>

<mosaic_0001>
module attributes {stable_mosaic.version = 11 : i64} {
  func.func @_fused_mhsa_kernel(%arg0: i32, %arg1: memref<1x64x64xbf16, #tpu.memory_space<vmem>>, %arg2: memref<192x64xbf16, #tpu.memory_space<vmem>>, %arg3: memref<8x8x64xf32, #tpu.memory_space<vmem>>, %arg4: memref<1x8x8x64xf32, #tpu.memory_space<vmem>>) attributes {dimension_semantics = [#tpu.dimension_semantics<core_parallel>], iteration_bounds = array<i64: 2>, scalar_prefetch = 0 : i64, scratch_operands = 0 : i64, tpu.core_type = #tpu.core_type<tc>, window_params = [{transform_indices = @transform_0, window_bounds = array<i64: 1, 64, 64>}, {pipeline_mode = #tpu.pipeline_mode<synchronous>, transform_indices = @transform_1, window_bounds = array<i64: 192, 64>}, {pipeline_mode = #tpu.pipeline_mode<synchronous>, transform_indices = @transform_2, window_bounds = array<i64: 8, 8, 64>}, {transform_indices = @transform_3, window_bounds = array<i64: 1, 8, 8, 64>}]} {
    %c0 = arith.constant 0 : index
    %c0_0 = arith.constant 0 : index
    %0 = vector.load %arg2[%c0, %c0_0] : memref<192x64xbf16, #tpu.memory_space<vmem>>, vector<192x64xbf16>
    %c0_1 = arith.constant 0 : index
    %c0_2 = arith.constant 0 : index
    %c0_3 = arith.constant 0 : index
    %1 = vector.load %arg1[%c0_1, %c0_2, %c0_3] : memref<1x64x64xbf16, #tpu.memory_space<vmem>>, vector<1x64x64xbf16>
    %2 = vector.shape_cast %1 : vector<1x64x64xbf16> to vector<64x64xbf16>
    %cst = arith.constant dense<0.000000e+00> : vector<192x64xf32>
    %3 = tpu.matmul %0, %2, %cst {dimension_numbers = #tpu.dot_dimension_numbers<[1], [0], [0], [1], [0, 0, 1, 1], [], []>} : vector<192x64xbf16>, vector<64x64xbf16>, vector<192x64xf32> -> vector<192x64xf32>
    %4 = vector.shape_cast %3 : vector<192x64xf32> to vector<8x24x64xf32>
    %5 = vector.extract_strided_slice %4 {offsets = [0, 0, 0], sizes = [8, 16, 64], strides = [1, 1, 1]} : vector<8x24x64xf32> to vector<8x16x64xf32>
    %6 = vector.extract_strided_slice %4 {offsets = [0, 8, 0], sizes = [8, 8, 64], strides = [1, 1, 1]} : vector<8x24x64xf32> to vector<8x8x64xf32>
    %7 = vector.extract_strided_slice %4 {offsets = [0, 16, 0], sizes = [8, 8, 64], strides = [1, 1, 1]} : vector<8x24x64xf32> to vector<8x8x64xf32>
    %c0_4 = arith.constant 0 : index
    %c0_5 = arith.constant 0 : index
    %c0_6 = arith.constant 0 : index
    %8 = vector.load %arg3[%c0_4, %c0_5, %c0_6] : memref<8x8x64xf32, #tpu.memory_space<vmem>>, vector<8x8x64xf32>
    %9 = tpu.concatenate %6, %8 in 1 : vector<8x8x64xf32>, vector<8x8x64xf32> -> vector<8x16x64xf32>
    %10 = arith.truncf %9 : vector<8x16x64xf32> to vector<8x16x64xbf16>
    %11 = arith.truncf %5 : vector<8x16x64xf32> to vector<8x16x64xbf16>
    "tpu.trace_start"() <{level = 10 : i32, message = "gcs,gct->gst"}> : () -> ()
    %cst_7 = arith.constant dense<0.000000e+00> : vector<8x64x64xf32>
    %12 = tpu.matmul %10, %11, %cst_7 {dimension_numbers = #tpu.dot_dimension_numbers<[1], [1], [2], [2], [0, 0, 0, 2, 1, 2], [0], [0]>} : vector<8x16x64xbf16>, vector<8x16x64xbf16>, vector<8x64x64xf32> -> vector<8x64x64xf32>
    "tpu.trace_stop"() : () -> ()
    %cst_8 = arith.constant dense<0xFF800000> : vector<8x64xf32>
    %13 = vector.multi_reduction <maximumf>, %12, %cst_8 [2] : vector<8x64x64xf32> to vector<8x64xf32>
    %14 = vector.shape_cast %13 : vector<8x64xf32> to vector<8x64x1xf32>
    %15 = vector.broadcast %14 : vector<8x64x1xf32> to vector<8x64x64xf32>
    %16 = arith.subf %12, %15 : vector<8x64x64xf32>
    %17 = math.exp %16 : vector<8x64x64xf32>
    %18 = arith.truncf %17 : vector<8x64x64xf32> to vector<8x64x64xbf16>
    %cst_9 = arith.constant 1.000000e+00 : f32
    %19 = vector.broadcast %cst_9 : f32 to vector<8x1x64xf32>
    %20 = tpu.concatenate %7, %19 in 1 : vector<8x8x64xf32>, vector<8x1x64xf32> -> vector<8x9x64xf32>
    %21 = arith.truncf %20 : vector<8x9x64xf32> to vector<8x9x64xbf16>
    "tpu.trace_start"() <{level = 10 : i32, message = "gcs,gqs->gcq"}> : () -> ()
    %cst_10 = arith.constant dense<0.000000e+00> : vector<8x9x64xf32>
    %22 = tpu.matmul %21, %18, %cst_10 {dimension_numbers = #tpu.dot_dimension_numbers<[2], [2], [1], [1], [0, 0, 0, 1, 1, 1], [0], [0]>} : vector<8x9x64xbf16>, vector<8x64x64xbf16>, vector<8x9x64xf32> -> vector<8x9x64xf32>
    "tpu.trace_stop"() : () -> ()
    %23 = vector.extract_strided_slice %22 {offsets = [0, 8, 0], sizes = [8, 1, 64], strides = [1, 1, 1]} : vector<8x9x64xf32> to vector<8x1x64xf32>
    %24 = vector.extract_strided_slice %22 {offsets = [0, 0, 0], sizes = [8, 8, 64], strides = [1, 1, 1]} : vector<8x9x64xf32> to vector<8x8x64xf32>
    %25 = tpu.reciprocal %23 {approx = true} : vector<8x1x64xf32> -> vector<8x1x64xf32>
    %26 = vector.broadcast %25 : vector<8x1x64xf32> to vector<8x8x64xf32>
    %27 = arith.mulf %24, %26 : vector<8x8x64xf32>
    %c0_11 = arith.constant 0 : index
    %c0_12 = arith.constant 0 : index
    %c0_13 = arith.constant 0 : index
    %c0_14 = arith.constant 0 : index
    %28 = vector.load %arg4[%c0_11, %c0_12, %c0_13, %c0_14] : memref<1x8x8x64xf32, #tpu.memory_space<vmem>>, vector<1x8x8x64xf32>
    %29 = vector.shape_cast %28 : vector<1x8x8x64xf32> to vector<8x8x64xf32>
    %30 = vector.shape_cast %27 : vector<8x8x64xf32> to vector<1x8x8x64xf32>
    tpu.vector_store %arg4[%c0_11, %c0_12, %c0_13, %c0_14], %30 {strides = array<i32>} : memref<1x8x8x64xf32, #tpu.memory_space<vmem>>, vector<1x8x8x64xf32>,
    return
  }
  func.func @transform_0(%arg0: i32) -> (i32, i32, i32) {
    %c0_i32 = arith.constant 0 : i32
    %c0_i32_0 = arith.constant 0 : i32
    %c0_i32_1 = arith.constant 0 : i32
    return %arg0, %c0_i32, %c0_i32_0 : i32, i32, i32
  }
  func.func @transform_1(%arg0: i32) -> (i32, i32) {
    %c0_i32 = arith.constant 0 : i32
    %c0_i32_0 = arith.constant 0 : i32
    %c0_i32_1 = arith.constant 0 : i32
    return %c0_i32, %c0_i32_0 : i32, i32
  }
  func.func @transform_2(%arg0: i32) -> (i32, i32, i32) {
    %c0_i32 = arith.constant 0 : i32
    %c0_i32_0 = arith.constant 0 : i32
    %c0_i32_1 = arith.constant 0 : i32
    %c0_i32_2 = arith.constant 0 : i32
    return %c0_i32, %c0_i32_0, %c0_i32_1 : i32, i32, i32
  }
  func.func @transform_3(%arg0: i32) -> (i32, i32, i32, i32) {
    %c0_i32 = arith.constant 0 : i32
    %c0_i32_0 = arith.constant 0 : i32
    %c0_i32_1 = arith.constant 0 : i32
    %c0_i32_2 = arith.constant 0 : i32
    return %arg0, %c0_i32, %c0_i32_0, %c0_i32_1 : i32, i32, i32, i32
  }
}

module attributes {stable_mosaic.version = 11 : i64} {
  func.func @_fused_mhsa_kernel(%arg0: i32, %arg1: memref<1x64x64xbf16, #tpu.memory_space<vmem>>, %arg2: memref<192x64xbf16, #tpu.memory_space<vmem>>, %arg3: memref<8x8x64xf32, #tpu.memory_space<vmem>>, %arg4: memref<1x8x8x64xf32, #tpu.memory_space<vmem>>) attributes {dimension_semantics = [#tpu.dimension_semantics<parallel>], iteration_bounds = array<i64: 2>, scalar_prefetch = 0 : i64, scratch_operands = 0 : i64, tpu.core_type = #tpu.core_type<tc>, window_params = [{transform_indices = @transform_0, window_bounds = array<i64: 1, 64, 64>}, {pipeline_mode = #tpu.pipeline_mode<synchronous>, transform_indices = @transform_1, window_bounds = array<i64: 192, 64>}, {pipeline_mode = #tpu.pipeline_mode<synchronous>, transform_indices = @transform_2, window_bounds = array<i64: 8, 8, 64>}, {transform_indices = @transform_3, window_bounds = array<i64: 1, 8, 8, 64>}]} {
    %c0 = arith.constant 0 : index
    %c0_0 = arith.constant 0 : index
    %0 = vector.load %arg2[%c0, %c0_0] : memref<192x64xbf16, #tpu.memory_space<vmem>>, vector<192x64xbf16>
    %c0_1 = arith.constant 0 : index
    %c0_2 = arith.constant 0 : index
    %c0_3 = arith.constant 0 : index
    %1 = vector.load %arg1[%c0_1, %c0_2, %c0_3] : memref<1x64x64xbf16, #tpu.memory_space<vmem>>, vector<1x64x64xbf16>
    %2 = vector.shape_cast %1 : vector<1x64x64xbf16> to vector<64x64xbf16>
    %cst = arith.constant dense<0.000000e+00> : vector<192x64xf32>
    %3 = tpu.matmul %0, %2, %cst {dimension_numbers = #tpu.dot_dimension_numbers<[1], [0], [0], [1], [0, 0, 1, 1], [], []>} : vector<192x64xbf16>, vector<64x64xbf16>, vector<192x64xf32> -> vector<192x64xf32>
    %4 = vector.shape_cast %3 : vector<192x64xf32> to vector<8x24x64xf32>
    %5 = vector.extract_strided_slice %4 {offsets = [0, 0, 0], sizes = [8, 16, 64], strides = [1, 1, 1]} : vector<8x24x64xf32> to vector<8x16x64xf32>
    %6 = vector.extract_strided_slice %4 {offsets = [0, 8, 0], sizes = [8, 8, 64], strides = [1, 1, 1]} : vector<8x24x64xf32> to vector<8x8x64xf32>
    %7 = vector.extract_strided_slice %4 {offsets = [0, 16, 0], sizes = [8, 8, 64], strides = [1, 1, 1]} : vector<8x24x64xf32> to vector<8x8x64xf32>
    %c0_4 = arith.constant 0 : index
    %c0_5 = arith.constant 0 : index
    %c0_6 = arith.constant 0 : index
    %8 = vector.load %arg3[%c0_4, %c0_5, %c0_6] : memref<8x8x64xf32, #tpu.memory_space<vmem>>, vector<8x8x64xf32>
    %9 = tpu.concatenate %6, %8 in 1 : vector<8x8x64xf32>, vector<8x8x64xf32> -> vector<8x16x64xf32>
    %10 = arith.truncf %9 : vector<8x16x64xf32> to vector<8x16x64xbf16>
    %11 = arith.truncf %5 : vector<8x16x64xf32> to vector<8x16x64xbf16>
    "tpu.trace_start"() <{level = 10 : i32, message = "gcs,gct->gst"}> : () -> ()
    %cst_7 = arith.constant dense<0.000000e+00> : vector<8x64x64xf32>
    %12 = tpu.matmul %10, %11, %cst_7 {dimension_numbers = #tpu.dot_dimension_numbers<[1], [1], [2], [2], [0, 0, 0, 2, 1, 2], [0], [0]>} : vector<8x16x64xbf16>, vector<8x16x64xbf16>, vector<8x64x64xf32> -> vector<8x64x64xf32>
    "tpu.trace_stop"() : () -> ()
    %cst_8 = arith.constant dense<0xFF800000> : vector<8x64xf32>
    %13 = vector.multi_reduction <maximumf>, %12, %cst_8 [2] : vector<8x64x64xf32> to vector<8x64xf32>
    %14 = vector.shape_cast %13 : vector<8x64xf32> to vector<8x64x1xf32>
    %15 = vector.broadcast %14 : vector<8x64x1xf32> to vector<8x64x64xf32>
    %16 = arith.subf %12, %15 : vector<8x64x64xf32>
    %17 = math.exp %16 : vector<8x64x64xf32>
    %18 = arith.truncf %17 : vector<8x64x64xf32> to vector<8x64x64xbf16>
    %cst_9 = arith.constant 1.000000e+00 : f32
    %19 = vector.broadcast %cst_9 : f32 to vector<8x1x64xf32>
    %20 = tpu.concatenate %7, %19 in 1 : vector<8x8x64xf32>, vector<8x1x64xf32> -> vector<8x9x64xf32>
    %21 = arith.truncf %20 : vector<8x9x64xf32> to vector<8x9x64xbf16>
    "tpu.trace_start"() <{level = 10 : i32, message = "gcs,gqs->gcq"}> : () -> ()
    %cst_10 = arith.constant dense<0.000000e+00> : vector<8x9x64xf32>
    %22 = tpu.matmul %21, %18, %cst_10 {dimension_numbers = #tpu.dot_dimension_numbers<[2], [2], [1], [1], [0, 0, 0, 1, 1, 1], [0], [0]>} : vector<8x9x64xbf16>, vector<8x64x64xbf16>, vector<8x9x64xf32> -> vector<8x9x64xf32>
    "tpu.trace_stop"() : () -> ()
    %23 = vector.extract_strided_slice %22 {offsets = [0, 8, 0], sizes = [8, 1, 64], strides = [1, 1, 1]} : vector<8x9x64xf32> to vector<8x1x64xf32>
    %24 = vector.extract_strided_slice %22 {offsets = [0, 0, 0], sizes = [8, 8, 64], strides = [1, 1, 1]} : vector<8x9x64xf32> to vector<8x8x64xf32>
    %25 = tpu.reciprocal %23 {approx = true} : vector<8x1x64xf32> -> vector<8x1x64xf32>
    %26 = vector.broadcast %25 : vector<8x1x64xf32> to vector<8x8x64xf32>
    %27 = arith.mulf %24, %26 : vector<8x8x64xf32>
    %c0_11 = arith.constant 0 : index
    %c0_12 = arith.constant 0 : index
    %c0_13 = arith.constant 0 : index
    %c0_14 = arith.constant 0 : index
    %28 = vector.load %arg4[%c0_11, %c0_12, %c0_13, %c0_14] : memref<1x8x8x64xf32, #tpu.memory_space<vmem>>, vector<1x8x8x64xf32>
    %29 = vector.shape_cast %28 : vector<1x8x8x64xf32> to vector<8x8x64xf32>
    %30 = vector.shape_cast %27 : vector<8x8x64xf32> to vector<1x8x8x64xf32>
    tpu.vector_store %arg4[%c0_11, %c0_12, %c0_13, %c0_14], %30 {strides = array<i32>} : memref<1x8x8x64xf32, #tpu.memory_space<vmem>>, vector<1x8x8x64xf32>,
    return
  }
  func.func @transform_0(%arg0: i32) -> (i32, i32, i32) {
    %c0_i32 = arith.constant 0 : i32
    %c0_i32_0 = arith.constant 0 : i32
    %c0_i32_1 = arith.constant 0 : i32
    return %arg0, %c0_i32, %c0_i32_0 : i32, i32, i32
  }
  func.func @transform_1(%arg0: i32) -> (i32, i32) {
    %c0_i32 = arith.constant 0 : i32
    %c0_i32_0 = arith.constant 0 : i32
    %c0_i32_1 = arith.constant 0 : i32
    return %c0_i32, %c0_i32_0 : i32, i32
  }
  func.func @transform_2(%arg0: i32) -> (i32, i32, i32) {
    %c0_i32 = arith.constant 0 : i32
    %c0_i32_0 = arith.constant 0 : i32
    %c0_i32_1 = arith.constant 0 : i32
    %c0_i32_2 = arith.constant 0 : i32
    return %c0_i32, %c0_i32_0, %c0_i32_1 : i32, i32, i32
  }
  func.func @transform_3(%arg0: i32) -> (i32, i32, i32, i32) {
    %c0_i32 = arith.constant 0 : i32
    %c0_i32_0 = arith.constant 0 : i32
    %c0_i32_1 = arith.constant 0 : i32
    %c0_i32_2 = arith.constant 0 : i32
    return %arg0, %c0_i32, %c0_i32_0, %c0_i32_1 : i32, i32, i32, i32
  }
}

</mosaic_0001>

<llo_original>
// kernel: mhsa3d_forward.1
$region0: #{mhsa3d_forward.1}
  #allocation0 [shape = 'u32[]', space=smem, size = 0x4, offset = 0x4, fixed_abs, tag = 'smem constant byte address 0x4 - core index']
  #allocation1 [shape = 'u32[72,128]{1,0:T(1,128)}', space=vmem, size = 0x9000, scoped, tag = 'internal scratch']
  %s0 = inlined_call_operand.vmem [shape: bf16[2,64,64], index: 0, kind: input, shape index: {}]
  %s1 = inlined_call_operand.vmem [shape: bf16[192,64], index: 1, kind: input, shape index: {}]
  %s2 = inlined_call_operand.vmem [shape: f32[8,8,64], index: 2, kind: input, shape index: {}]
  %s3 = inlined_call_operand.vmem [shape: f32[2,8,8,64], index: 3, kind: output, shape index: {}]
  %s4 = sld [smem:[#allocation0]]
  $region45: #{mhsa3d_forward.1} parent=0
    _
  %s6 = ssub.s32 1, %s4
  %s7 = scalar_select 0, %s6, %s4
  loop: start=0, step=1, limit=4
  $region2: #{mhsa3d_forward.1} parent=0 // loop_pre_header
    _
  $region3: #{mhsa3d_forward.1} parent=0 // loop_header
    %s9 = sphi 0, %s13
    %p10 = scmp.ge.s32.totalorder %s9, 4
    %s19 = sphi 0, %s21
    %s22 = sphi 0, %s19
    %s23 = sphi 0, %s22
    %s39 = sphi 0, %s23
    %s43 = sphi 0, %s43
    %s45 = sphi 0, %s43
    %s46 = sphi 0, %s45
    %s60 = sphi 0, %s46
    %s64 = sphi 0, %s64
    %s66 = sphi 0, %s64
    %s67 = sphi 0, %s66
    %s81 = sphi 0, %s67
    %s87 = sphi 0, %s89
    %s90 = sphi 0, %s87
    %s91 = sphi 0, %s90
    %s107 = sphi 0, %s91
  $region4: #{mhsa3d_forward.1} parent=0 // loop_header_branch
    %12 = sbr.rel (%p10) target = $region8
  $region5: #{mhsa3d_forward.1} parent=0 // loop_body
    %s14 = ssub.s32 %s9, 1
    %s15 = ssub.s32 %s9, 2
    %s16 = sadd.s32 %s9, 1
    %s17 = ssub.s32 %s9, %s16
    %p18 = scmp.eq.s32.totalorder %s17, 0
    %s20 = sadd.s32 %s19, 1
    %s21 = scalar_select %p18, %s19, %s20
    %p24 = pneg %p18
    %p25 = scmp.eq.s32.totalorder %s9, 1
    %p26 = por %p24, %p25
    %p27 = scmp.ne.s32.totalorder %s19, %s22
    %p28 = scmp.eq.s32.totalorder %s9, 0
    %p29 = por %p27, %p28
    %p30 = scmp.ne.s32.totalorder %s19, %s22
    %p31 = scmp.eq.s32.totalorder %s14, 1
    %p32 = por %p30, %p31
    %p33 = scmp.ne.s32.totalorder %s22, %s23
    %p34 = scmp.eq.s32.totalorder %s14, 0
    %p35 = por %p33, %p34
    %p36 = scmp.ne.s32.totalorder %s22, %s23
    %p37 = scmp.eq.s32.totalorder %s15, 1
    %p38 = por %p36, %p37
    %p40 = scmp.ne.s32.totalorder %s23, %s39
    %p41 = scmp.eq.s32.totalorder %s15, 0
    %p42 = por %p40, %p41
    %s44 = sadd.s32 %s43, 1
    %p47 = scmp.eq.s32.totalorder %s9, 1
    %p48 = scmp.ne.s32.totalorder %s43, %s45
    %p49 = scmp.eq.s32.totalorder %s9, 0
    %p50 = por %p48, %p49
    %p51 = scmp.ne.s32.totalorder %s43, %s45
    %p52 = scmp.eq.s32.totalorder %s14, 1
    %p53 = por %p51, %p52
    %p54 = scmp.ne.s32.totalorder %s45, %s46
    %p55 = scmp.eq.s32.totalorder %s14, 0
    %p56 = por %p54, %p55
    %p57 = scmp.ne.s32.totalorder %s45, %s46
    %p58 = scmp.eq.s32.totalorder %s15, 1
    %p59 = por %p57, %p58
    %p61 = scmp.ne.s32.totalorder %s46, %s60
    %p62 = scmp.eq.s32.totalorder %s15, 0
    %p63 = por %p61, %p62
    %s65 = sadd.s32 %s64, 1
    %p68 = scmp.eq.s32.totalorder %s9, 1
    %p69 = scmp.ne.s32.totalorder %s64, %s66
    %p70 = scmp.eq.s32.totalorder %s9, 0
    %p71 = por %p69, %p70
    %p72 = scmp.ne.s32.totalorder %s64, %s66
    %p73 = scmp.eq.s32.totalorder %s14, 1
    %p74 = por %p72, %p73
    %p75 = scmp.ne.s32.totalorder %s66, %s67
    %p76 = scmp.eq.s32.totalorder %s14, 0
    %p77 = por %p75, %p76
    %p78 = scmp.ne.s32.totalorder %s66, %s67
    %p79 = scmp.eq.s32.totalorder %s15, 1
    %p80 = por %p78, %p79
    %p82 = scmp.ne.s32.totalorder %s67, %s81
    %p83 = scmp.eq.s32.totalorder %s15, 0
    %p84 = por %p82, %p83
    %s85 = ssub.s32 %s9, %s16
    %p86 = scmp.eq.s32.totalorder %s85, 0
    %s88 = sadd.s32 %s87, 1
    %s89 = scalar_select %p86, %s87, %s88
    %p92 = pneg %p86
    %p93 = scmp.eq.s32.totalorder %s9, 1
    %p94 = por %p92, %p93
    %p95 = scmp.ne.s32.totalorder %s87, %s90
    %p96 = scmp.eq.s32.totalorder %s9, 0
    %p97 = por %p95, %p96
    %p98 = scmp.ne.s32.totalorder %s87, %s90
    %p99 = scmp.eq.s32.totalorder %s14, 1
    %p100 = por %p98, %p99
    %p101 = scmp.ne.s32.totalorder %s90, %s91
    %p102 = scmp.eq.s32.totalorder %s14, 0
    %p103 = por %p101, %p102
    %p104 = scmp.ne.s32.totalorder %s90, %s91
    %p105 = scmp.eq.s32.totalorder %s15, 1
    %p106 = por %p104, %p105
    %p108 = scmp.ne.s32.totalorder %s91, %s107
    %p109 = scmp.eq.s32.totalorder %s15, 0
    %p110 = por %p108, %p109
    %p111 = scmp.le.s32.totalorder 1, %s9
    %p112 = scmp.lt.s32.totalorder %s9, 3
    %p113 = pnand %p111, %p112
    %p114 = pneg %p113
    // Predicated region
    $region9: #{mhsa3d_forward.1} parent=5 // pred_check
      _
    $region10: #{mhsa3d_forward.1} parent=5 // pred_check_branch
      %116 = sbr.rel (%p113) target = $region12
    $region11: #{mhsa3d_forward.1} parent=5 // pred_region
      %s117 = ssub.s32 %s9, 1
      // Predicated region
      $region13: #{mhsa3d_forward.1} parent=11 // pred_check
        %p118 = pneg %p56
      $region14: #{mhsa3d_forward.1} parent=11 // pred_check_branch
        %120 = sbr.rel (%p118) target = $region16
      $region15: #{mhsa3d_forward.1} parent=11 // pred_region
        _
      $region16: #{mhsa3d_forward.1} parent=11 // pred_fallthru
        _
      // Predicated region
      $region17: #{mhsa3d_forward.1} parent=11 // pred_check
        %p121 = pneg %p77
      $region18: #{mhsa3d_forward.1} parent=11 // pred_check_branch
        %123 = sbr.rel (%p121) target = $region20
      $region19: #{mhsa3d_forward.1} parent=11 // pred_region
        _
      $region20: #{mhsa3d_forward.1} parent=11 // pred_fallthru
        _
    $region12: #{mhsa3d_forward.1} parent=5 // pred_fallthru
      _
    %p124 = scmp.lt.s32.totalorder %s9, 2
    // Predicated region
    $region21: #{mhsa3d_forward.1} parent=5 // pred_check
      %p125 = pneg %p124
    $region22: #{mhsa3d_forward.1} parent=5 // pred_check_branch
      %127 = sbr.rel (%p125) target = $region24
    $region23: #{mhsa3d_forward.1} parent=5 // pred_region
      // Predicated region
      $region25: #{mhsa3d_forward.1} parent=23 // pred_check
        %p128 = pneg %p29
      $region26: #{mhsa3d_forward.1} parent=23 // pred_check_branch
        %130 = sbr.rel (%p128) target = $region28
      $region27: #{mhsa3d_forward.1} parent=23 // pred_region
        %p131 = scmp.lt.s32.totalorder %s9, 1
        %s132 = scalar_select %p131, %s9, 1
        %s133 = smul.addr %s132, 8
        %s134 = smul.addr %s133, 4
        %s135 = scalar_lea.vmem %s0, %s134
      $region28: #{mhsa3d_forward.1} parent=23 // pred_fallthru
        _
    $region24: #{mhsa3d_forward.1} parent=5 // pred_fallthru
      _
    %p136 = scmp.le.s32.totalorder 1, %s9
    %p137 = scmp.lt.s32.totalorder %s9, 3
    %p138 = pnand %p136, %p137
    %p139 = pneg %p138
    // Predicated region
    $region29: #{mhsa3d_forward.1} parent=5 // pred_check
      _
    $region30: #{mhsa3d_forward.1} parent=5 // pred_check_branch
      %141 = sbr.rel (%p138) target = $region32
    $region31: #{mhsa3d_forward.1} parent=5 // pred_region
      %s142 = ssub.s32 %s9, 1
      %p143 = scmp.lt.s32.totalorder %s14, 1
      %s144 = scalar_select %p143, %s14, 1
      %s145 = smul.addr %s144, 8
      %s146 = smul.addr %s145, 4
      %s147 = scalar_lea.vmem %s0, %s146
      %p148 = pneg %p35
      %p149 = pneg %p32
      %p150 = pneg %p56
      %p151 = pneg %p53
      %p152 = pneg %p77
      %p153 = pneg %p74
      %p154 = pneg %p103
      %p155 = pneg %p100
      %p156 = scmp.lt.s32.totalorder %s14, 1
      %s157 = scalar_select %p156, %s14, 1
      %s158 = smul.addr %s157, 8
      %s159 = smul.addr %s158, 8
      %s160 = scalar_lea.vmem %s3, %s159
      %p161 = scmp.lt.s32.totalorder %s14, 1
      %s162 = scalar_select %p161, %s14, 1
      %s163 = smul.addr %s162, 8
      %s164 = smul.addr %s163, 4
      %s165 = scalar_lea.vmem %s0, %s164
      %p166 = scmp.lt.s32.totalorder %s14, 1
      %s167 = scalar_select %p166, %s14, 1
      %s168 = smul.addr %s167, 8
      %s169 = smul.addr %s168, 8
      %s170 = scalar_lea.vmem %s3, %s169
      %v172 = vld [vmem:[%s1] sm:$0xf]
      %v173 = vld [vmem:[%s1 + $0x4] sm:$0xf]
      %v174 = vld [vmem:[%s1 + $0x8] sm:$0xf]
      %v175 = vld [vmem:[%s1 + $0xc] sm:$0xf]
      %v176 = vld [vmem:[%s1 + $0x10] sm:$0xf]
      %v177 = vld [vmem:[%s1 + $0x14] sm:$0xf]
      %v178 = vld [vmem:[%s1 + $0x18] sm:$0xf]
      %v179 = vld [vmem:[%s1 + $0x1c] sm:$0xf]
      %v180 = vld [vmem:[%s1 + $0x20] sm:$0xf]
      %v181 = vld [vmem:[%s1 + $0x24] sm:$0xf]
      %v182 = vld [vmem:[%s1 + $0x28] sm:$0xf]
      %v183 = vld [vmem:[%s1 + $0x2c] sm:$0xf]
      %v184 = vld [vmem:[%s1 + $0x30] sm:$0xf]
      %v185 = vld [vmem:[%s1 + $0x34] sm:$0xf]
      %v186 = vld [vmem:[%s1 + $0x38] sm:$0xf]
      %v187 = vld [vmem:[%s1 + $0x3c] sm:$0xf]
      %v188 = vld [vmem:[%s1 + $0x40] sm:$0xf]
      %v189 = vld [vmem:[%s1 + $0x44] sm:$0xf]
      %v190 = vld [vmem:[%s1 + $0x48] sm:$0xf]
      %v191 = vld [vmem:[%s1 + $0x4c] sm:$0xf]
      %v192 = vld [vmem:[%s1 + $0x50] sm:$0xf]
      %v193 = vld [vmem:[%s1 + $0x54] sm:$0xf]
      %v194 = vld [vmem:[%s1 + $0x58] sm:$0xf]
      %v195 = vld [vmem:[%s1 + $0x5c] sm:$0xf]
      %v196 = vld [vmem:[%s165] sm:$0xf]
      %v197 = vld [vmem:[%s165 + $0x4] sm:$0xf]
      %v198 = vld [vmem:[%s165 + $0x8] sm:$0xf]
      %v199 = vld [vmem:[%s165 + $0xc] sm:$0xf]
      %v200 = vld [vmem:[%s165 + $0x10] sm:$0xf]
      %v201 = vld [vmem:[%s165 + $0x14] sm:$0xf]
      %v202 = vld [vmem:[%s165 + $0x18] sm:$0xf]
      %v203 = vld [vmem:[%s165 + $0x1c] sm:$0xf]
      %v228 = vunpack.c.l.b16 %v172
      %v229 = vunpack.c.l.b16 %v173
      %v230 = vunpack.c.l.b16 %v174
      %v231 = vunpack.c.l.b16 %v175
      %v232 = vunpack.c.l.b16 %v176
      %v233 = vunpack.c.l.b16 %v177
      %v234 = vunpack.c.l.b16 %v178
      %v235 = vunpack.c.l.b16 %v179
      %v236 = vunpack.c.l.b16 %v180
      %v237 = vunpack.c.l.b16 %v181
      %v238 = vunpack.c.l.b16 %v182
      %v239 = vunpack.c.l.b16 %v183
      %v240 = vunpack.c.l.b16 %v184
      %v241 = vunpack.c.l.b16 %v185
      %v242 = vunpack.c.l.b16 %v186
      %v243 = vunpack.c.l.b16 %v187
      %v244 = vunpack.c.l.b16 %v188
      %v245 = vunpack.c.l.b16 %v189
      %v246 = vunpack.c.l.b16 %v190
      %v247 = vunpack.c.l.b16 %v191
      %v248 = vunpack.c.l.b16 %v192
      %v249 = vunpack.c.l.b16 %v193
      %v250 = vunpack.c.l.b16 %v194
      %v251 = vunpack.c.l.b16 %v195
      %v252 = vpack.c.b16 %v229, %v228
      %v253 = vpack.c.b16 %v231, %v230
      %v254 = vpack.c.b16 %v233, %v232
      %v255 = vpack.c.b16 %v235, %v234
      %v256 = vpack.c.b16 %v237, %v236
      %v257 = vpack.c.b16 %v239, %v238
      %v258 = vpack.c.b16 %v241, %v240
      %v259 = vpack.c.b16 %v243, %v242
      %v260 = vpack.c.b16 %v245, %v244
      %v261 = vpack.c.b16 %v247, %v246
      %v262 = vpack.c.b16 %v249, %v248
      %v263 = vpack.c.b16 %v251, %v250
      %v272 = vunpack.c.l.b16 %v196
      %v273 = vunpack.c.l.b16 %v197
      %v274 = vunpack.c.l.b16 %v198
      %v275 = vunpack.c.l.b16 %v199
      %v276 = vunpack.c.l.b16 %v200
      %v277 = vunpack.c.l.b16 %v201
      %v278 = vunpack.c.l.b16 %v202
      %v279 = vunpack.c.l.b16 %v203
      %v280 = vpack.c.b16 %v273, %v272
      %v281 = vpack.c.b16 %v275, %v274
      %v282 = vpack.c.b16 %v277, %v276
      %v283 = vpack.c.b16 %v279, %v278
      %vm288 = vcmask 523264
      %v290 = vsel %vm288, %v252, 0
      %v293 = vsel %vm288, %v253, 0
      %v296 = vsel %vm288, %v254, 0
      %v299 = vsel %vm288, %v255, 0
      %v302 = vsel %vm288, %v256, 0
      %v305 = vsel %vm288, %v257, 0
      %v308 = vsel %vm288, %v258, 0
      %v311 = vsel %vm288, %v259, 0
      %v314 = vsel %vm288, %v260, 0
      %v317 = vsel %vm288, %v261, 0
      %v320 = vsel %vm288, %v262, 0
      %v323 = vsel %vm288, %v263, 0
      %325 = vmatpush.bf16.msra.mxu0 0
      %326 = vmatpush.bf16.msra.mxu0 0
      %327 = vmatpush.bf16.msra.mxu0 0
      %328 = vmatpush.bf16.msra.mxu0 0
      %329 = vmatpush.bf16.msra.mxu0 %v283
      %330 = vmatpush.bf16.msra.mxu0 %v282
      %331 = vmatpush.bf16.msra.mxu0 %v281
      %332 = vmatpush.bf16.msra.mxu0 %v280
      %333 = vmatmul.bf16.gmra.mxu0 %v290
      %v334 = vpop.f32.mrf.mxu0
      %v335 = vadd.f32 0.0, %v334
      %v336 = vpop.f32.mrf.mxu0
      %v337 = vadd.f32 0.0, %v336
      %338 = vmatmul.bf16.gmra.mxu0 %v293
      %v339 = vpop.f32.mrf.mxu0
      %v340 = vadd.f32 0.0, %v339
      %v341 = vpop.f32.mrf.mxu0
      %v342 = vadd.f32 0.0, %v341
      %343 = vmatmul.bf16.gmra.mxu0 %v296
      %v344 = vpop.f32.mrf.mxu0
      %v345 = vadd.f32 0.0, %v344
      %v346 = vpop.f32.mrf.mxu0
      %v347 = vadd.f32 0.0, %v346
      %348 = vmatmul.bf16.gmra.mxu0 %v299
      %v349 = vpop.f32.mrf.mxu0
      %v350 = vadd.f32 0.0, %v349
      %v351 = vpop.f32.mrf.mxu0
      %v352 = vadd.f32 0.0, %v351
      %353 = vmatmul.bf16.gmra.mxu0 %v302
      %v354 = vpop.f32.mrf.mxu0
      %v355 = vadd.f32 0.0, %v354
      %v356 = vpop.f32.mrf.mxu0
      %v357 = vadd.f32 0.0, %v356
      %358 = vmatmul.bf16.gmra.mxu0 %v305
      %v359 = vpop.f32.mrf.mxu0
      %v360 = vadd.f32 0.0, %v359
      %v361 = vpop.f32.mrf.mxu0
      %v362 = vadd.f32 0.0, %v361
      %363 = vmatmul.bf16.gmra.mxu0 %v308
      %v364 = vpop.f32.mrf.mxu0
      %v365 = vadd.f32 0.0, %v364
      %v366 = vpop.f32.mrf.mxu0
      %v367 = vadd.f32 0.0, %v366
      %368 = vmatmul.bf16.gmra.mxu0 %v311
      %v369 = vpop.f32.mrf.mxu0
      %v370 = vadd.f32 0.0, %v369
      %v371 = vpop.f32.mrf.mxu0
      %v372 = vadd.f32 0.0, %v371
      %373 = vmatmul.bf16.gmra.mxu0 %v314
      %v374 = vpop.f32.mrf.mxu0
      %v375 = vadd.f32 0.0, %v374
      %v376 = vpop.f32.mrf.mxu0
      %v377 = vadd.f32 0.0, %v376
      %378 = vmatmul.bf16.gmra.mxu0 %v317
      %v379 = vpop.f32.mrf.mxu0
      %v380 = vadd.f32 0.0, %v379
      %v381 = vpop.f32.mrf.mxu0
      %v382 = vadd.f32 0.0, %v381
      %383 = vmatmul.bf16.gmra.mxu0 %v320
      %v384 = vpop.f32.mrf.mxu0
      %v385 = vadd.f32 0.0, %v384
      %v386 = vpop.f32.mrf.mxu0
      %v387 = vadd.f32 0.0, %v386
      %388 = vmatmul.bf16.gmra.mxu0 %v323
      %v389 = vpop.f32.mrf.mxu0
      %v390 = vadd.f32 0.0, %v389
      %v391 = vpop.f32.mrf.mxu0
      %v392 = vadd.f32 0.0, %v391
      %393 = vdwg.mxu0
      %v394 = vld [vmem:[%s2] sm:$0xff]
      %v395 = vld [vmem:[%s2 + $0x8] sm:$0xff]
      %v396 = vld [vmem:[%s2 + $0x10] sm:$0xff]
      %v397 = vld [vmem:[%s2 + $0x18] sm:$0xff]
      %v398 = vld [vmem:[%s2 + $0x20] sm:$0xff]
      %v399 = vld [vmem:[%s2 + $0x28] sm:$0xff]
      %v400 = vld [vmem:[%s2 + $0x30] sm:$0xff]
      %v401 = vld [vmem:[%s2 + $0x38] sm:$0xff]
      %v402 = vpack.c.bf16 %v337, %v337
      %v403 = vpack.c.bf16 %v394, %v394
      %v404 = vpack.c.bf16 %v345, %v345
      %v405 = vpack.c.bf16 %v395, %v395
      %v406 = vpack.c.bf16 %v352, %v352
      %v407 = vpack.c.bf16 %v396, %v396
      %v408 = vpack.c.bf16 %v360, %v360
      %v409 = vpack.c.bf16 %v397, %v397
      %v410 = vpack.c.bf16 %v367, %v367
      %v411 = vpack.c.bf16 %v398, %v398
      %v412 = vpack.c.bf16 %v375, %v375
      %v413 = vpack.c.bf16 %v399, %v399
      %v414 = vpack.c.bf16 %v382, %v382
      %v415 = vpack.c.bf16 %v400, %v400
      %v416 = vpack.c.bf16 %v390, %v390
      %v417 = vpack.c.bf16 %v401, %v401
      %v418 = vpack.c.bf16 %v335, %v335
      %v419 = vpack.c.bf16 %v342, %v342
      %v420 = vpack.c.bf16 %v350, %v350
      %v421 = vpack.c.bf16 %v357, %v357
      %v422 = vpack.c.bf16 %v365, %v365
      %v423 = vpack.c.bf16 %v372, %v372
      %v424 = vpack.c.bf16 %v380, %v380
      %v425 = vpack.c.bf16 %v387, %v387
      %v428 = vunpack.c.l.b16 %v402
      %v429 = vunpack.c.l.b16 %v403
      %v430 = vpack.c.b16 %v429, %v428
      %432 = vxpose.xlu0.c.b16.start [1/8] %v430, 128
      %433 = vxpose.xlu0.c.b16.cont [2/8] 0, 128
      %434 = vxpose.xlu0.c.b16.cont [3/8] 0, 128
      %435 = vxpose.xlu0.c.b16.cont [4/8] 0, 128
      %436 = vxpose.xlu0.c.b16.cont [5/8] 0, 128
      %437 = vxpose.xlu0.c.b16.cont [6/8] 0, 128
      %438 = vxpose.xlu0.c.b16.cont [7/8] 0, 128
      %439 = vxpose.xlu0.c.b16.end [8/8] 0, 128
      %v440 = vpop.trf.xlu0
      %v441 = vpop.trf.xlu0
      %v442 = vpop.trf.xlu0
      %v443 = vpop.trf.xlu0
      %v444 = vpop.trf.xlu0
      %v445 = vpop.trf.xlu0
      %v446 = vpop.trf.xlu0
      %v447 = vpop.trf.xlu0
      %v449 = vunpack.c.l.b16 %v418
      %v450 = vpack.c.b16 %v428, %v449
      %vm452 = vcmask 130048
      %v454 = vsel %vm452, %v440, 0
      %v457 = vsel %vm452, %v441, 0
      %v460 = vsel %vm452, %v442, 0
      %v463 = vsel %vm452, %v443, 0
      %465 = vmatpush.bf16.msra.mxu0 0
      %466 = vmatpush.bf16.msra.mxu0 0
      %467 = vmatpush.bf16.msra.mxu0 0
      %468 = vmatpush.bf16.msra.mxu0 0
      %469 = vmatpush.bf16.msra.mxu0 0
      %470 = vmatpush.bf16.msra.mxu0 0
      %471 = vmatpush.bf16.msra.mxu0 0
      %472 = vmatpush.bf16.msra.mxu0 %v450
      %473 = vmatmul.bf16.gmra.mxu0 %v454
      %v474 = vpop.f32.mrf.mxu0
      %v475 = vadd.f32 0.0, %v474
      %v476 = vpop.f32.mrf.mxu0
      %v477 = vadd.f32 0.0, %v476
      %478 = vmatmul.bf16.gmra.mxu0 %v457
      %v479 = vpop.f32.mrf.mxu0
      %v480 = vadd.f32 0.0, %v479
      %v481 = vpop.f32.mrf.mxu0
      %v482 = vadd.f32 0.0, %v481
      %483 = vmatmul.bf16.gmra.mxu0 %v460
      %v484 = vpop.f32.mrf.mxu0
      %v485 = vadd.f32 0.0, %v484
      %v486 = vpop.f32.mrf.mxu0
      %v487 = vadd.f32 0.0, %v486
      %488 = vmatmul.bf16.gmra.mxu0 %v463
      %v489 = vpop.f32.mrf.mxu0
      %v490 = vadd.f32 0.0, %v489
      %v491 = vpop.f32.mrf.mxu0
      %v492 = vadd.f32 0.0, %v491
      %493 = vdwg.mxu0
      %v496 = vunpack.c.l.b16 %v404
      %v497 = vunpack.c.l.b16 %v405
      %v498 = vpack.c.b16 %v497, %v496
      %500 = vxpose.xlu0.c.b16.start [1/8] %v498, 128
      %501 = vxpose.xlu0.c.b16.cont [2/8] 0, 128
      %502 = vxpose.xlu0.c.b16.cont [3/8] 0, 128
      %503 = vxpose.xlu0.c.b16.cont [4/8] 0, 128
      %504 = vxpose.xlu0.c.b16.cont [5/8] 0, 128
      %505 = vxpose.xlu0.c.b16.cont [6/8] 0, 128
      %506 = vxpose.xlu0.c.b16.cont [7/8] 0, 128
      %507 = vxpose.xlu0.c.b16.end [8/8] 0, 128
      %v508 = vpop.trf.xlu0
      %v509 = vpop.trf.xlu0
      %v510 = vpop.trf.xlu0
      %v511 = vpop.trf.xlu0
      %v512 = vpop.trf.xlu0
      %v513 = vpop.trf.xlu0
      %v514 = vpop.trf.xlu0
      %v515 = vpop.trf.xlu0
      %v517 = vunpack.c.l.b16 %v419
      %v518 = vpack.c.b16 %v496, %v517
      %v521 = vsel %vm452, %v508, 0
      %v524 = vsel %vm452, %v509, 0
      %v527 = vsel %vm452, %v510, 0
      %v530 = vsel %vm452, %v511, 0
      %532 = vmatpush.bf16.msra.mxu0 0
      %533 = vmatpush.bf16.msra.mxu0 0
      %534 = vmatpush.bf16.msra.mxu0 0
      %535 = vmatpush.bf16.msra.mxu0 0
      %536 = vmatpush.bf16.msra.mxu0 0
      %537 = vmatpush.bf16.msra.mxu0 0
      %538 = vmatpush.bf16.msra.mxu0 0
      %539 = vmatpush.bf16.msra.mxu0 %v518
      %540 = vmatmul.bf16.gmra.mxu0 %v521
      %v541 = vpop.f32.mrf.mxu0
      %v542 = vadd.f32 0.0, %v541
      %v543 = vpop.f32.mrf.mxu0
      %v544 = vadd.f32 0.0, %v543
      %545 = vmatmul.bf16.gmra.mxu0 %v524
      %v546 = vpop.f32.mrf.mxu0
      %v547 = vadd.f32 0.0, %v546
      %v548 = vpop.f32.mrf.mxu0
      %v549 = vadd.f32 0.0, %v548
      %550 = vmatmul.bf16.gmra.mxu0 %v527
      %v551 = vpop.f32.mrf.mxu0
      %v552 = vadd.f32 0.0, %v551
      %v553 = vpop.f32.mrf.mxu0
      %v554 = vadd.f32 0.0, %v553
      %555 = vmatmul.bf16.gmra.mxu0 %v530
      %v556 = vpop.f32.mrf.mxu0
      %v557 = vadd.f32 0.0, %v556
      %v558 = vpop.f32.mrf.mxu0
      %v559 = vadd.f32 0.0, %v558
      %560 = vdwg.mxu0
      %v563 = vunpack.c.l.b16 %v406
      %v564 = vunpack.c.l.b16 %v407
      %v565 = vpack.c.b16 %v564, %v563
      %567 = vxpose.xlu0.c.b16.start [1/8] %v565, 128
      %568 = vxpose.xlu0.c.b16.cont [2/8] 0, 128
      %569 = vxpose.xlu0.c.b16.cont [3/8] 0, 128
      %570 = vxpose.xlu0.c.b16.cont [4/8] 0, 128
      %571 = vxpose.xlu0.c.b16.cont [5/8] 0, 128
      %572 = vxpose.xlu0.c.b16.cont [6/8] 0, 128
      %573 = vxpose.xlu0.c.b16.cont [7/8] 0, 128
      %574 = vxpose.xlu0.c.b16.end [8/8] 0, 128
      %v575 = vpop.trf.xlu0
      %v576 = vpop.trf.xlu0
      %v577 = vpop.trf.xlu0
      %v578 = vpop.trf.xlu0
      %v579 = vpop.trf.xlu0
      %v580 = vpop.trf.xlu0
      %v581 = vpop.trf.xlu0
      %v582 = vpop.trf.xlu0
      %v584 = vunpack.c.l.b16 %v420
      %v585 = vpack.c.b16 %v563, %v584
      %v588 = vsel %vm452, %v575, 0
      %v591 = vsel %vm452, %v576, 0
      %v594 = vsel %vm452, %v577, 0
      %v597 = vsel %vm452, %v578, 0
      %599 = vmatpush.bf16.msra.mxu0 0
      %600 = vmatpush.bf16.msra.mxu0 0
      %601 = vmatpush.bf16.msra.mxu0 0
      %602 = vmatpush.bf16.msra.mxu0 0
      %603 = vmatpush.bf16.msra.mxu0 0
      %604 = vmatpush.bf16.msra.mxu0 0
      %605 = vmatpush.bf16.msra.mxu0 0
      %606 = vmatpush.bf16.msra.mxu0 %v585
      %607 = vmatmul.bf16.gmra.mxu0 %v588
      %v608 = vpop.f32.mrf.mxu0
      %v609 = vadd.f32 0.0, %v608
      %v610 = vpop.f32.mrf.mxu0
      %v611 = vadd.f32 0.0, %v610
      %612 = vmatmul.bf16.gmra.mxu0 %v591
      %v613 = vpop.f32.mrf.mxu0
      %v614 = vadd.f32 0.0, %v613
      %v615 = vpop.f32.mrf.mxu0
      %v616 = vadd.f32 0.0, %v615
      %617 = vmatmul.bf16.gmra.mxu0 %v594
      %v618 = vpop.f32.mrf.mxu0
      %v619 = vadd.f32 0.0, %v618
      %v620 = vpop.f32.mrf.mxu0
      %v621 = vadd.f32 0.0, %v620
      %622 = vmatmul.bf16.gmra.mxu0 %v597
      %v623 = vpop.f32.mrf.mxu0
      %v624 = vadd.f32 0.0, %v623
      %v625 = vpop.f32.mrf.mxu0
      %v626 = vadd.f32 0.0, %v625
      %627 = vdwg.mxu0
      %v630 = vunpack.c.l.b16 %v408
      %v631 = vunpack.c.l.b16 %v409
      %v632 = vpack.c.b16 %v631, %v630
      %634 = vxpose.xlu0.c.b16.start [1/8] %v632, 128
      %635 = vxpose.xlu0.c.b16.cont [2/8] 0, 128
      %636 = vxpose.xlu0.c.b16.cont [3/8] 0, 128
      %637 = vxpose.xlu0.c.b16.cont [4/8] 0, 128
      %638 = vxpose.xlu0.c.b16.cont [5/8] 0, 128
      %639 = vxpose.xlu0.c.b16.cont [6/8] 0, 128
      %640 = vxpose.xlu0.c.b16.cont [7/8] 0, 128
      %641 = vxpose.xlu0.c.b16.end [8/8] 0, 128
      %v642 = vpop.trf.xlu0
      %v643 = vpop.trf.xlu0
      %v644 = vpop.trf.xlu0
      %v645 = vpop.trf.xlu0
      %v646 = vpop.trf.xlu0
      %v647 = vpop.trf.xlu0
      %v648 = vpop.trf.xlu0
      %v649 = vpop.trf.xlu0
      %v651 = vunpack.c.l.b16 %v421
      %v652 = vpack.c.b16 %v630, %v651
      %v655 = vsel %vm452, %v642, 0
      %v658 = vsel %vm452, %v643, 0
      %v661 = vsel %vm452, %v644, 0
      %v664 = vsel %vm452, %v645, 0
      %666 = vmatpush.bf16.msra.mxu0 0
      %667 = vmatpush.bf16.msra.mxu0 0
      %668 = vmatpush.bf16.msra.mxu0 0
      %669 = vmatpush.bf16.msra.mxu0 0
      %670 = vmatpush.bf16.msra.mxu0 0
      %671 = vmatpush.bf16.msra.mxu0 0
      %672 = vmatpush.bf16.msra.mxu0 0
      %673 = vmatpush.bf16.msra.mxu0 %v652
      %674 = vmatmul.bf16.gmra.mxu0 %v655
      %v675 = vpop.f32.mrf.mxu0
      %v676 = vadd.f32 0.0, %v675
      %v677 = vpop.f32.mrf.mxu0
      %v678 = vadd.f32 0.0, %v677
      %679 = vmatmul.bf16.gmra.mxu0 %v658
      %v680 = vpop.f32.mrf.mxu0
      %v681 = vadd.f32 0.0, %v680
      %v682 = vpop.f32.mrf.mxu0
      %v683 = vadd.f32 0.0, %v682
      %684 = vmatmul.bf16.gmra.mxu0 %v661
      %v685 = vpop.f32.mrf.mxu0
      %v686 = vadd.f32 0.0, %v685
      %v687 = vpop.f32.mrf.mxu0
      %v688 = vadd.f32 0.0, %v687
      %689 = vmatmul.bf16.gmra.mxu0 %v664
      %v690 = vpop.f32.mrf.mxu0
      %v691 = vadd.f32 0.0, %v690
      %v692 = vpop.f32.mrf.mxu0
      %v693 = vadd.f32 0.0, %v692
      %694 = vdwg.mxu0
      %v697 = vunpack.c.l.b16 %v410
      %v698 = vunpack.c.l.b16 %v411
      %v699 = vpack.c.b16 %v698, %v697
      %701 = vxpose.xlu0.c.b16.start [1/8] %v699, 128
      %702 = vxpose.xlu0.c.b16.cont [2/8] 0, 128
      %703 = vxpose.xlu0.c.b16.cont [3/8] 0, 128
      %704 = vxpose.xlu0.c.b16.cont [4/8] 0, 128
      %705 = vxpose.xlu0.c.b16.cont [5/8] 0, 128
      %706 = vxpose.xlu0.c.b16.cont [6/8] 0, 128
      %707 = vxpose.xlu0.c.b16.cont [7/8] 0, 128
      %708 = vxpose.xlu0.c.b16.end [8/8] 0, 128
      %v709 = vpop.trf.xlu0
      %v710 = vpop.trf.xlu0
      %v711 = vpop.trf.xlu0
      %v712 = vpop.trf.xlu0
      %v713 = vpop.trf.xlu0
      %v714 = vpop.trf.xlu0
      %v715 = vpop.trf.xlu0
      %v716 = vpop.trf.xlu0
      %v718 = vunpack.c.l.b16 %v422
      %v719 = vpack.c.b16 %v697, %v718
      %v722 = vsel %vm452, %v709, 0
      %v725 = vsel %vm452, %v710, 0
      %v728 = vsel %vm452, %v711, 0
      %v731 = vsel %vm452, %v712, 0
      %733 = vmatpush.bf16.msra.mxu0 0
      %734 = vmatpush.bf16.msra.mxu0 0
      %735 = vmatpush.bf16.msra.mxu0 0
      %736 = vmatpush.bf16.msra.mxu0 0
      %737 = vmatpush.bf16.msra.mxu0 0
      %738 = vmatpush.bf16.msra.mxu0 0
      %739 = vmatpush.bf16.msra.mxu0 0
      %740 = vmatpush.bf16.msra.mxu0 %v719
      %741 = vmatmul.bf16.gmra.mxu0 %v722
      %v742 = vpop.f32.mrf.mxu0
      %v743 = vadd.f32 0.0, %v742
      %v744 = vpop.f32.mrf.mxu0
      %v745 = vadd.f32 0.0, %v744
      %746 = vmatmul.bf16.gmra.mxu0 %v725
      %v747 = vpop.f32.mrf.mxu0
      %v748 = vadd.f32 0.0, %v747
      %v749 = vpop.f32.mrf.mxu0
      %v750 = vadd.f32 0.0, %v749
      %751 = vmatmul.bf16.gmra.mxu0 %v728
      %v752 = vpop.f32.mrf.mxu0
      %v753 = vadd.f32 0.0, %v752
      %v754 = vpop.f32.mrf.mxu0
      %v755 = vadd.f32 0.0, %v754
      %756 = vmatmul.bf16.gmra.mxu0 %v731
      %v757 = vpop.f32.mrf.mxu0
      %v758 = vadd.f32 0.0, %v757
      %v759 = vpop.f32.mrf.mxu0
      %v760 = vadd.f32 0.0, %v759
      %761 = vdwg.mxu0
      %v764 = vunpack.c.l.b16 %v412
      %v765 = vunpack.c.l.b16 %v413
      %v766 = vpack.c.b16 %v765, %v764
      %768 = vxpose.xlu0.c.b16.start [1/8] %v766, 128
      %769 = vxpose.xlu0.c.b16.cont [2/8] 0, 128
      %770 = vxpose.xlu0.c.b16.cont [3/8] 0, 128
      %771 = vxpose.xlu0.c.b16.cont [4/8] 0, 128
      %772 = vxpose.xlu0.c.b16.cont [5/8] 0, 128
      %773 = vxpose.xlu0.c.b16.cont [6/8] 0, 128
      %774 = vxpose.xlu0.c.b16.cont [7/8] 0, 128
      %775 = vxpose.xlu0.c.b16.end [8/8] 0, 128
      %v776 = vpop.trf.xlu0
      %v777 = vpop.trf.xlu0
      %v778 = vpop.trf.xlu0
      %v779 = vpop.trf.xlu0
      %v780 = vpop.trf.xlu0
      %v781 = vpop.trf.xlu0
      %v782 = vpop.trf.xlu0
      %v783 = vpop.trf.xlu0
      %v785 = vunpack.c.l.b16 %v423
      %v786 = vpack.c.b16 %v764, %v785
      %v789 = vsel %vm452, %v776, 0
      %v792 = vsel %vm452, %v777, 0
      %v795 = vsel %vm452, %v778, 0
      %v798 = vsel %vm452, %v779, 0
      %800 = vmatpush.bf16.msra.mxu0 0
      %801 = vmatpush.bf16.msra.mxu0 0
      %802 = vmatpush.bf16.msra.mxu0 0
      %803 = vmatpush.bf16.msra.mxu0 0
      %804 = vmatpush.bf16.msra.mxu0 0
      %805 = vmatpush.bf16.msra.mxu0 0
      %806 = vmatpush.bf16.msra.mxu0 0
      %807 = vmatpush.bf16.msra.mxu0 %v786
      %808 = vmatmul.bf16.gmra.mxu0 %v789
      %v809 = vpop.f32.mrf.mxu0
      %v810 = vadd.f32 0.0, %v809
      %v811 = vpop.f32.mrf.mxu0
      %v812 = vadd.f32 0.0, %v811
      %813 = vmatmul.bf16.gmra.mxu0 %v792
      %v814 = vpop.f32.mrf.mxu0
      %v815 = vadd.f32 0.0, %v814
      %v816 = vpop.f32.mrf.mxu0
      %v817 = vadd.f32 0.0, %v816
      %818 = vmatmul.bf16.gmra.mxu0 %v795
      %v819 = vpop.f32.mrf.mxu0
      %v820 = vadd.f32 0.0, %v819
      %v821 = vpop.f32.mrf.mxu0
      %v822 = vadd.f32 0.0, %v821
      %823 = vmatmul.bf16.gmra.mxu0 %v798
      %v824 = vpop.f32.mrf.mxu0
      %v825 = vadd.f32 0.0, %v824
      %v826 = vpop.f32.mrf.mxu0
      %v827 = vadd.f32 0.0, %v826
      %828 = vdwg.mxu0
      %v831 = vunpack.c.l.b16 %v414
      %v832 = vunpack.c.l.b16 %v415
      %v833 = vpack.c.b16 %v832, %v831
      %835 = vxpose.xlu0.c.b16.start [1/8] %v833, 128
      %836 = vxpose.xlu0.c.b16.cont [2/8] 0, 128
      %837 = vxpose.xlu0.c.b16.cont [3/8] 0, 128
      %838 = vxpose.xlu0.c.b16.cont [4/8] 0, 128
      %839 = vxpose.xlu0.c.b16.cont [5/8] 0, 128
      %840 = vxpose.xlu0.c.b16.cont [6/8] 0, 128
      %841 = vxpose.xlu0.c.b16.cont [7/8] 0, 128
      %842 = vxpose.xlu0.c.b16.end [8/8] 0, 128
      %v843 = vpop.trf.xlu0
      %v844 = vpop.trf.xlu0
      %v845 = vpop.trf.xlu0
      %v846 = vpop.trf.xlu0
      %v847 = vpop.trf.xlu0
      %v848 = vpop.trf.xlu0
      %v849 = vpop.trf.xlu0
      %v850 = vpop.trf.xlu0
      %v852 = vunpack.c.l.b16 %v424
      %v853 = vpack.c.b16 %v831, %v852
      %v856 = vsel %vm452, %v843, 0
      %v859 = vsel %vm452, %v844, 0
      %v862 = vsel %vm452, %v845, 0
      %v865 = vsel %vm452, %v846, 0
      %867 = vmatpush.bf16.msra.mxu0 0
      %868 = vmatpush.bf16.msra.mxu0 0
      %869 = vmatpush.bf16.msra.mxu0 0
      %870 = vmatpush.bf16.msra.mxu0 0
      %871 = vmatpush.bf16.msra.mxu0 0
      %872 = vmatpush.bf16.msra.mxu0 0
      %873 = vmatpush.bf16.msra.mxu0 0
      %874 = vmatpush.bf16.msra.mxu0 %v853
      %875 = vmatmul.bf16.gmra.mxu0 %v856
      %v876 = vpop.f32.mrf.mxu0
      %v877 = vadd.f32 0.0, %v876
      %v878 = vpop.f32.mrf.mxu0
      %v879 = vadd.f32 0.0, %v878
      %880 = vmatmul.bf16.gmra.mxu0 %v859
      %v881 = vpop.f32.mrf.mxu0
      %v882 = vadd.f32 0.0, %v881
      %v883 = vpop.f32.mrf.mxu0
      %v884 = vadd.f32 0.0, %v883
      %885 = vmatmul.bf16.gmra.mxu0 %v862
      %v886 = vpop.f32.mrf.mxu0
      %v887 = vadd.f32 0.0, %v886
      %v888 = vpop.f32.mrf.mxu0
      %v889 = vadd.f32 0.0, %v888
      %890 = vmatmul.bf16.gmra.mxu0 %v865
      %v891 = vpop.f32.mrf.mxu0
      %v892 = vadd.f32 0.0, %v891
      %v893 = vpop.f32.mrf.mxu0
      %v894 = vadd.f32 0.0, %v893
      %895 = vdwg.mxu0
      %v898 = vunpack.c.l.b16 %v416
      %v899 = vunpack.c.l.b16 %v417
      %v900 = vpack.c.b16 %v899, %v898
      %902 = vxpose.xlu0.c.b16.start [1/8] %v900, 128
      %903 = vxpose.xlu0.c.b16.cont [2/8] 0, 128
      %904 = vxpose.xlu0.c.b16.cont [3/8] 0, 128
      %905 = vxpose.xlu0.c.b16.cont [4/8] 0, 128
      %906 = vxpose.xlu0.c.b16.cont [5/8] 0, 128
      %907 = vxpose.xlu0.c.b16.cont [6/8] 0, 128
      %908 = vxpose.xlu0.c.b16.cont [7/8] 0, 128
      %909 = vxpose.xlu0.c.b16.end [8/8] 0, 128
      %v910 = vpop.trf.xlu0
      %v911 = vpop.trf.xlu0
      %v912 = vpop.trf.xlu0
      %v913 = vpop.trf.xlu0
      %v914 = vpop.trf.xlu0
      %v915 = vpop.trf.xlu0
      %v916 = vpop.trf.xlu0
      %v917 = vpop.trf.xlu0
      %v919 = vunpack.c.l.b16 %v425
      %v920 = vpack.c.b16 %v898, %v919
      %v923 = vsel %vm452, %v910, 0
      %v926 = vsel %vm452, %v911, 0
      %v929 = vsel %vm452, %v912, 0
      %v932 = vsel %vm452, %v913, 0
      %934 = vmatpush.bf16.msra.mxu0 0
      %935 = vmatpush.bf16.msra.mxu0 0
      %936 = vmatpush.bf16.msra.mxu0 0
      %937 = vmatpush.bf16.msra.mxu0 0
      %938 = vmatpush.bf16.msra.mxu0 0
      %939 = vmatpush.bf16.msra.mxu0 0
      %940 = vmatpush.bf16.msra.mxu0 0
      %941 = vmatpush.bf16.msra.mxu0 %v920
      %942 = vmatmul.bf16.gmra.mxu0 %v923
      %v943 = vpop.f32.mrf.mxu0
      %v944 = vadd.f32 0.0, %v943
      %v945 = vpop.f32.mrf.mxu0
      %v946 = vadd.f32 0.0, %v945
      %947 = vmatmul.bf16.gmra.mxu0 %v926
      %v948 = vpop.f32.mrf.mxu0
      %v949 = vadd.f32 0.0, %v948
      %v950 = vpop.f32.mrf.mxu0
      %v951 = vadd.f32 0.0, %v950
      %952 = vmatmul.bf16.gmra.mxu0 %v929
      %v953 = vpop.f32.mrf.mxu0
      %v954 = vadd.f32 0.0, %v953
      %v955 = vpop.f32.mrf.mxu0
      %v956 = vadd.f32 0.0, %v955
      %957 = vmatmul.bf16.gmra.mxu0 %v932
      %v958 = vpop.f32.mrf.mxu0
      %v959 = vadd.f32 0.0, %v958
      %v960 = vpop.f32.mrf.mxu0
      %v961 = vadd.f32 0.0, %v960
      %962 = vdwg.mxu0
      %v963 = vsel %vm288, %v475, -inf
      %964 = vmax.xlane.f32.xlu0 %v963
      %v965 = vpop.xlane.xlu0 %964
      %v966 = vsel %vm288, %v477, -inf
      %967 = vmax.xlane.f32.xlu0 %v966
      %v968 = vpop.xlane.xlu0 %967
      %v969 = vsel %vm288, %v480, -inf
      %970 = vmax.xlane.f32.xlu0 %v969
      %v971 = vpop.xlane.xlu0 %970
      %v972 = vsel %vm288, %v482, -inf
      %973 = vmax.xlane.f32.xlu0 %v972
      %v974 = vpop.xlane.xlu0 %973
      %v975 = vsel %vm288, %v485, -inf
      %976 = vmax.xlane.f32.xlu0 %v975
      %v977 = vpop.xlane.xlu0 %976
      %v978 = vsel %vm288, %v487, -inf
      %979 = vmax.xlane.f32.xlu0 %v978
      %v980 = vpop.xlane.xlu0 %979
      %v981 = vsel %vm288, %v490, -inf
      %982 = vmax.xlane.f32.xlu0 %v981
      %v983 = vpop.xlane.xlu0 %982
      %v984 = vsel %vm288, %v492, -inf
      %985 = vmax.xlane.f32.xlu0 %v984
      %v986 = vpop.xlane.xlu0 %985
      %v987 = vsel %vm288, %v542, -inf
      %988 = vmax.xlane.f32.xlu0 %v987
      %v989 = vpop.xlane.xlu0 %988
      %v990 = vsel %vm288, %v544, -inf
      %991 = vmax.xlane.f32.xlu0 %v990
      %v992 = vpop.xlane.xlu0 %991
      %v993 = vsel %vm288, %v547, -inf
      %994 = vmax.xlane.f32.xlu0 %v993
      %v995 = vpop.xlane.xlu0 %994
      %v996 = vsel %vm288, %v549, -inf
      %997 = vmax.xlane.f32.xlu0 %v996
      %v998 = vpop.xlane.xlu0 %997
      %v999 = vsel %vm288, %v552, -inf
      %1000 = vmax.xlane.f32.xlu0 %v999
      %v1001 = vpop.xlane.xlu0 %1000
      %v1002 = vsel %vm288, %v554, -inf
      %1003 = vmax.xlane.f32.xlu0 %v1002
      %v1004 = vpop.xlane.xlu0 %1003
      %v1005 = vsel %vm288, %v557, -inf
      %1006 = vmax.xlane.f32.xlu0 %v1005
      %v1007 = vpop.xlane.xlu0 %1006
      %v1008 = vsel %vm288, %v559, -inf
      %1009 = vmax.xlane.f32.xlu0 %v1008
      %v1010 = vpop.xlane.xlu0 %1009
      %v1011 = vsel %vm288, %v609, -inf
      %1012 = vmax.xlane.f32.xlu0 %v1011
      %v1013 = vpop.xlane.xlu0 %1012
      %v1014 = vsel %vm288, %v611, -inf
      %1015 = vmax.xlane.f32.xlu0 %v1014
      %v1016 = vpop.xlane.xlu0 %1015
      %v1017 = vsel %vm288, %v614, -inf
      %1018 = vmax.xlane.f32.xlu0 %v1017
      %v1019 = vpop.xlane.xlu0 %1018
      %v1020 = vsel %vm288, %v616, -inf
      %1021 = vmax.xlane.f32.xlu0 %v1020
      %v1022 = vpop.xlane.xlu0 %1021
      %v1023 = vsel %vm288, %v619, -inf
      %1024 = vmax.xlane.f32.xlu0 %v1023
      %v1025 = vpop.xlane.xlu0 %1024
      %v1026 = vsel %vm288, %v621, -inf
      %1027 = vmax.xlane.f32.xlu0 %v1026
      %v1028 = vpop.xlane.xlu0 %1027
      %v1029 = vsel %vm288, %v624, -inf
      %1030 = vmax.xlane.f32.xlu0 %v1029
      %v1031 = vpop.xlane.xlu0 %1030
      %v1032 = vsel %vm288, %v626, -inf
      %1033 = vmax.xlane.f32.xlu0 %v1032
      %v1034 = vpop.xlane.xlu0 %1033
      %v1035 = vsel %vm288, %v676, -inf
      %1036 = vmax.xlane.f32.xlu0 %v1035
      %v1037 = vpop.xlane.xlu0 %1036
      %v1038 = vsel %vm288, %v678, -inf
      %1039 = vmax.xlane.f32.xlu0 %v1038
      %v1040 = vpop.xlane.xlu0 %1039
      %v1041 = vsel %vm288, %v681, -inf
      %1042 = vmax.xlane.f32.xlu0 %v1041
      %v1043 = vpop.xlane.xlu0 %1042
      %v1044 = vsel %vm288, %v683, -inf
      %1045 = vmax.xlane.f32.xlu0 %v1044
      %v1046 = vpop.xlane.xlu0 %1045
      %v1047 = vsel %vm288, %v686, -inf
      %1048 = vmax.xlane.f32.xlu0 %v1047
      %v1049 = vpop.xlane.xlu0 %1048
      %v1050 = vsel %vm288, %v688, -inf
      %1051 = vmax.xlane.f32.xlu0 %v1050
      %v1052 = vpop.xlane.xlu0 %1051
      %v1053 = vsel %vm288, %v691, -inf
      %1054 = vmax.xlane.f32.xlu0 %v1053
      %v1055 = vpop.xlane.xlu0 %1054
      %v1056 = vsel %vm288, %v693, -inf
      %1057 = vmax.xlane.f32.xlu0 %v1056
      %v1058 = vpop.xlane.xlu0 %1057
      %v1059 = vsel %vm288, %v743, -inf
      %1060 = vmax.xlane.f32.xlu0 %v1059
      %v1061 = vpop.xlane.xlu0 %1060
      %v1062 = vsel %vm288, %v745, -inf
      %1063 = vmax.xlane.f32.xlu0 %v1062
      %v1064 = vpop.xlane.xlu0 %1063
      %v1065 = vsel %vm288, %v748, -inf
      %1066 = vmax.xlane.f32.xlu0 %v1065
      %v1067 = vpop.xlane.xlu0 %1066
      %v1068 = vsel %vm288, %v750, -inf
      %1069 = vmax.xlane.f32.xlu0 %v1068
      %v1070 = vpop.xlane.xlu0 %1069
      %v1071 = vsel %vm288, %v753, -inf
      %1072 = vmax.xlane.f32.xlu0 %v1071
      %v1073 = vpop.xlane.xlu0 %1072
      %v1074 = vsel %vm288, %v755, -inf
      %1075 = vmax.xlane.f32.xlu0 %v1074
      %v1076 = vpop.xlane.xlu0 %1075
      %v1077 = vsel %vm288, %v758, -inf
      %1078 = vmax.xlane.f32.xlu0 %v1077
      %v1079 = vpop.xlane.xlu0 %1078
      %v1080 = vsel %vm288, %v760, -inf
      %1081 = vmax.xlane.f32.xlu0 %v1080
      %v1082 = vpop.xlane.xlu0 %1081
      %v1083 = vsel %vm288, %v810, -inf
      %1084 = vmax.xlane.f32.xlu0 %v1083
      %v1085 = vpop.xlane.xlu0 %1084
      %v1086 = vsel %vm288, %v812, -inf
      %1087 = vmax.xlane.f32.xlu0 %v1086
      %v1088 = vpop.xlane.xlu0 %1087
      %v1089 = vsel %vm288, %v815, -inf
      %1090 = vmax.xlane.f32.xlu0 %v1089
      %v1091 = vpop.xlane.xlu0 %1090
      %v1092 = vsel %vm288, %v817, -inf
      %1093 = vmax.xlane.f32.xlu0 %v1092
      %v1094 = vpop.xlane.xlu0 %1093
      %v1095 = vsel %vm288, %v820, -inf
      %1096 = vmax.xlane.f32.xlu0 %v1095
      %v1097 = vpop.xlane.xlu0 %1096
      %v1098 = vsel %vm288, %v822, -inf
      %1099 = vmax.xlane.f32.xlu0 %v1098
      %v1100 = vpop.xlane.xlu0 %1099
      %v1101 = vsel %vm288, %v825, -inf
      %1102 = vmax.xlane.f32.xlu0 %v1101
      %v1103 = vpop.xlane.xlu0 %1102
      %v1104 = vsel %vm288, %v827, -inf
      %1105 = vmax.xlane.f32.xlu0 %v1104
      %v1106 = vpop.xlane.xlu0 %1105
      %v1107 = vsel %vm288, %v877, -inf
      %1108 = vmax.xlane.f32.xlu0 %v1107
      %v1109 = vpop.xlane.xlu0 %1108
      %v1110 = vsel %vm288, %v879, -inf
      %1111 = vmax.xlane.f32.xlu0 %v1110
      %v1112 = vpop.xlane.xlu0 %1111
      %v1113 = vsel %vm288, %v882, -inf
      %1114 = vmax.xlane.f32.xlu0 %v1113
      %v1115 = vpop.xlane.xlu0 %1114
      %v1116 = vsel %vm288, %v884, -inf
      %1117 = vmax.xlane.f32.xlu0 %v1116
      %v1118 = vpop.xlane.xlu0 %1117
      %v1119 = vsel %vm288, %v887, -inf
      %1120 = vmax.xlane.f32.xlu0 %v1119
      %v1121 = vpop.xlane.xlu0 %1120
      %v1122 = vsel %vm288, %v889, -inf
      %1123 = vmax.xlane.f32.xlu0 %v1122
      %v1124 = vpop.xlane.xlu0 %1123
      %v1125 = vsel %vm288, %v892, -inf
      %1126 = vmax.xlane.f32.xlu0 %v1125
      %v1127 = vpop.xlane.xlu0 %1126
      %v1128 = vsel %vm288, %v894, -inf
      %1129 = vmax.xlane.f32.xlu0 %v1128
      %v1130 = vpop.xlane.xlu0 %1129
      %v1131 = vsel %vm288, %v944, -inf
      %1132 = vmax.xlane.f32.xlu0 %v1131
      %v1133 = vpop.xlane.xlu0 %1132
      %v1134 = vsel %vm288, %v946, -inf
      %1135 = vmax.xlane.f32.xlu0 %v1134
      %v1136 = vpop.xlane.xlu0 %1135
      %v1137 = vsel %vm288, %v949, -inf
      %1138 = vmax.xlane.f32.xlu0 %v1137
      %v1139 = vpop.xlane.xlu0 %1138
      %v1140 = vsel %vm288, %v951, -inf
      %1141 = vmax.xlane.f32.xlu0 %v1140
      %v1142 = vpop.xlane.xlu0 %1141
      %v1143 = vsel %vm288, %v954, -inf
      %1144 = vmax.xlane.f32.xlu0 %v1143
      %v1145 = vpop.xlane.xlu0 %1144
      %v1146 = vsel %vm288, %v956, -inf
      %1147 = vmax.xlane.f32.xlu0 %v1146
      %v1148 = vpop.xlane.xlu0 %1147
      %v1149 = vsel %vm288, %v959, -inf
      %1150 = vmax.xlane.f32.xlu0 %v1149
      %v1151 = vpop.xlane.xlu0 %1150
      %v1152 = vsel %vm288, %v961, -inf
      %1153 = vmax.xlane.f32.xlu0 %v1152
      %v1154 = vpop.xlane.xlu0 %1153
      %v1155 = vsub.f32 %v475, %v965
      %v1156 = vsub.f32 %v477, %v968
      %v1157 = vsub.f32 %v480, %v971
      %v1158 = vsub.f32 %v482, %v974
      %v1159 = vsub.f32 %v485, %v977
      %v1160 = vsub.f32 %v487, %v980
      %v1161 = vsub.f32 %v490, %v983
      %v1162 = vsub.f32 %v492, %v986
      %v1163 = vsub.f32 %v542, %v989
      %v1164 = vsub.f32 %v544, %v992
      %v1165 = vsub.f32 %v547, %v995
      %v1166 = vsub.f32 %v549, %v998
      %v1167 = vsub.f32 %v552, %v1001
      %v1168 = vsub.f32 %v554, %v1004
      %v1169 = vsub.f32 %v557, %v1007
      %v1170 = vsub.f32 %v559, %v1010
      %v1171 = vsub.f32 %v609, %v1013
      %v1172 = vsub.f32 %v611, %v1016
      %v1173 = vsub.f32 %v614, %v1019
      %v1174 = vsub.f32 %v616, %v1022
      %v1175 = vsub.f32 %v619, %v1025
      %v1176 = vsub.f32 %v621, %v1028
      %v1177 = vsub.f32 %v624, %v1031
      %v1178 = vsub.f32 %v626, %v1034
      %v1179 = vsub.f32 %v676, %v1037
      %v1180 = vsub.f32 %v678, %v1040
      %v1181 = vsub.f32 %v681, %v1043
      %v1182 = vsub.f32 %v683, %v1046
      %v1183 = vsub.f32 %v686, %v1049
      %v1184 = vsub.f32 %v688, %v1052
      %v1185 = vsub.f32 %v691, %v1055
      %v1186 = vsub.f32 %v693, %v1058
      %v1187 = vsub.f32 %v743, %v1061
      %v1188 = vsub.f32 %v745, %v1064
      %v1189 = vsub.f32 %v748, %v1067
      %v1190 = vsub.f32 %v750, %v1070
      %v1191 = vsub.f32 %v753, %v1073
      %v1192 = vsub.f32 %v755, %v1076
      %v1193 = vsub.f32 %v758, %v1079
      %v1194 = vsub.f32 %v760, %v1082
      %v1195 = vsub.f32 %v810, %v1085
      %v1196 = vsub.f32 %v812, %v1088
      %v1197 = vsub.f32 %v815, %v1091
      %v1198 = vsub.f32 %v817, %v1094
      %v1199 = vsub.f32 %v820, %v1097
      %v1200 = vsub.f32 %v822, %v1100
      %v1201 = vsub.f32 %v825, %v1103
      %v1202 = vsub.f32 %v827, %v1106
      %v1203 = vsub.f32 %v877, %v1109
      %v1204 = vsub.f32 %v879, %v1112
      %v1205 = vsub.f32 %v882, %v1115
      %v1206 = vsub.f32 %v884, %v1118
      %v1207 = vsub.f32 %v887, %v1121
      %v1208 = vsub.f32 %v889, %v1124
      %v1209 = vsub.f32 %v892, %v1127
      %v1210 = vsub.f32 %v894, %v1130
      %v1211 = vsub.f32 %v944, %v1133
      %v1212 = vsub.f32 %v946, %v1136
      %v1213 = vsub.f32 %v949, %v1139
      %v1214 = vsub.f32 %v951, %v1142
      %v1215 = vsub.f32 %v954, %v1145
      %v1216 = vsub.f32 %v956, %v1148
      %v1217 = vsub.f32 %v959, %v1151
      %v1218 = vsub.f32 %v961, %v1154
      %v1219 = vmul.f32 %v1155, 1.442695
      %v1220 = vpow.pop %v1219
      %v1221 = vmul.f32 %v1156, 1.442695
      %v1222 = vpow.pop %v1221
      %v1223 = vmul.f32 %v1157, 1.442695
      %v1224 = vpow.pop %v1223
      %v1225 = vmul.f32 %v1158, 1.442695
      %v1226 = vpow.pop %v1225
      %v1227 = vmul.f32 %v1159, 1.442695
      %v1228 = vpow.pop %v1227
      %v1229 = vmul.f32 %v1160, 1.442695
      %v1230 = vpow.pop %v1229
      %v1231 = vmul.f32 %v1161, 1.442695
      %v1232 = vpow.pop %v1231
      %v1233 = vmul.f32 %v1162, 1.442695
      %v1234 = vpow.pop %v1233
      %v1235 = vmul.f32 %v1163, 1.442695
      %v1236 = vpow.pop %v1235
      %v1237 = vmul.f32 %v1164, 1.442695
      %v1238 = vpow.pop %v1237
      %v1239 = vmul.f32 %v1165, 1.442695
      %v1240 = vpow.pop %v1239
      %v1241 = vmul.f32 %v1166, 1.442695
      %v1242 = vpow.pop %v1241
      %v1243 = vmul.f32 %v1167, 1.442695
      %v1244 = vpow.pop %v1243
      %v1245 = vmul.f32 %v1168, 1.442695
      %v1246 = vpow.pop %v1245
      %v1247 = vmul.f32 %v1169, 1.442695
      %v1248 = vpow.pop %v1247
      %v1249 = vmul.f32 %v1170, 1.442695
      %v1250 = vpow.pop %v1249
      %v1251 = vmul.f32 %v1171, 1.442695
      %v1252 = vpow.pop %v1251
      %v1253 = vmul.f32 %v1172, 1.442695
      %v1254 = vpow.pop %v1253
      %v1255 = vmul.f32 %v1173, 1.442695
      %v1256 = vpow.pop %v1255
      %v1257 = vmul.f32 %v1174, 1.442695
      %v1258 = vpow.pop %v1257
      %v1259 = vmul.f32 %v1175, 1.442695
      %v1260 = vpow.pop %v1259
      %v1261 = vmul.f32 %v1176, 1.442695
      %v1262 = vpow.pop %v1261
      %v1263 = vmul.f32 %v1177, 1.442695
      %v1264 = vpow.pop %v1263
      %v1265 = vmul.f32 %v1178, 1.442695
      %v1266 = vpow.pop %v1265
      %v1267 = vmul.f32 %v1179, 1.442695
      %v1268 = vpow.pop %v1267
      %v1269 = vmul.f32 %v1180, 1.442695
      %v1270 = vpow.pop %v1269
      %v1271 = vmul.f32 %v1181, 1.442695
      %v1272 = vpow.pop %v1271
      %v1273 = vmul.f32 %v1182, 1.442695
      %v1274 = vpow.pop %v1273
      %v1275 = vmul.f32 %v1183, 1.442695
      %v1276 = vpow.pop %v1275
      %v1277 = vmul.f32 %v1184, 1.442695
      %v1278 = vpow.pop %v1277
      %v1279 = vmul.f32 %v1185, 1.442695
      %v1280 = vpow.pop %v1279
      %v1281 = vmul.f32 %v1186, 1.442695
      %v1282 = vpow.pop %v1281
      %v1283 = vmul.f32 %v1187, 1.442695
      %v1284 = vpow.pop %v1283
      %v1285 = vmul.f32 %v1188, 1.442695
      %v1286 = vpow.pop %v1285
      %v1287 = vmul.f32 %v1189, 1.442695
      %v1288 = vpow.pop %v1287
      %v1289 = vmul.f32 %v1190, 1.442695
      %v1290 = vpow.pop %v1289
      %v1291 = vmul.f32 %v1191, 1.442695
      %v1292 = vpow.pop %v1291
      %v1293 = vmul.f32 %v1192, 1.442695
      %v1294 = vpow.pop %v1293
      %v1295 = vmul.f32 %v1193, 1.442695
      %v1296 = vpow.pop %v1295
      %v1297 = vmul.f32 %v1194, 1.442695
      %v1298 = vpow.pop %v1297
      %v1299 = vmul.f32 %v1195, 1.442695
      %v1300 = vpow.pop %v1299
      %v1301 = vmul.f32 %v1196, 1.442695
      %v1302 = vpow.pop %v1301
      %v1303 = vmul.f32 %v1197, 1.442695
      %v1304 = vpow.pop %v1303
      %v1305 = vmul.f32 %v1198, 1.442695
      %v1306 = vpow.pop %v1305
      %v1307 = vmul.f32 %v1199, 1.442695
      %v1308 = vpow.pop %v1307
      %v1309 = vmul.f32 %v1200, 1.442695
      %v1310 = vpow.pop %v1309
      %v1311 = vmul.f32 %v1201, 1.442695
      %v1312 = vpow.pop %v1311
      %v1313 = vmul.f32 %v1202, 1.442695
      %v1314 = vpow.pop %v1313
      %v1315 = vmul.f32 %v1203, 1.442695
      %v1316 = vpow.pop %v1315
      %v1317 = vmul.f32 %v1204, 1.442695
      %v1318 = vpow.pop %v1317
      %v1319 = vmul.f32 %v1205, 1.442695
      %v1320 = vpow.pop %v1319
      %v1321 = vmul.f32 %v1206, 1.442695
      %v1322 = vpow.pop %v1321
      %v1323 = vmul.f32 %v1207, 1.442695
      %v1324 = vpow.pop %v1323
      %v1325 = vmul.f32 %v1208, 1.442695
      %v1326 = vpow.pop %v1325
      %v1327 = vmul.f32 %v1209, 1.442695
      %v1328 = vpow.pop %v1327
      %v1329 = vmul.f32 %v1210, 1.442695
      %v1330 = vpow.pop %v1329
      %v1331 = vmul.f32 %v1211, 1.442695
      %v1332 = vpow.pop %v1331
      %v1333 = vmul.f32 %v1212, 1.442695
      %v1334 = vpow.pop %v1333
      %v1335 = vmul.f32 %v1213, 1.442695
      %v1336 = vpow.pop %v1335
      %v1337 = vmul.f32 %v1214, 1.442695
      %v1338 = vpow.pop %v1337
      %v1339 = vmul.f32 %v1215, 1.442695
      %v1340 = vpow.pop %v1339
      %v1341 = vmul.f32 %v1216, 1.442695
      %v1342 = vpow.pop %v1341
      %v1343 = vmul.f32 %v1217, 1.442695
      %v1344 = vpow.pop %v1343
      %v1345 = vmul.f32 %v1218, 1.442695
      %v1346 = vpow.pop %v1345
      %v1347 = vpack.c.bf16 %v1220, %v1220
      %v1348 = vpack.c.bf16 %v1222, %v1222
      %v1349 = vpack.c.bf16 %v1224, %v1224
      %v1350 = vpack.c.bf16 %v1226, %v1226
      %v1351 = vpack.c.bf16 %v1228, %v1228
      %v1352 = vpack.c.bf16 %v1230, %v1230
      %v1353 = vpack.c.bf16 %v1232, %v1232
      %v1354 = vpack.c.bf16 %v1234, %v1234
      %v1355 = vpack.c.bf16 %v1236, %v1236
      %v1356 = vpack.c.bf16 %v1238, %v1238
      %v1357 = vpack.c.bf16 %v1240, %v1240
      %v1358 = vpack.c.bf16 %v1242, %v1242
      %v1359 = vpack.c.bf16 %v1244, %v1244
      %v1360 = vpack.c.bf16 %v1246, %v1246
      %v1361 = vpack.c.bf16 %v1248, %v1248
      %v1362 = vpack.c.bf16 %v1250, %v1250
      %v1363 = vpack.c.bf16 %v1252, %v1252
      %v1364 = vpack.c.bf16 %v1254, %v1254
      %v1365 = vpack.c.bf16 %v1256, %v1256
      %v1366 = vpack.c.bf16 %v1258, %v1258
      %v1367 = vpack.c.bf16 %v1260, %v1260
      %v1368 = vpack.c.bf16 %v1262, %v1262
      %v1369 = vpack.c.bf16 %v1264, %v1264
      %v1370 = vpack.c.bf16 %v1266, %v1266
      %v1371 = vpack.c.bf16 %v1268, %v1268
      %v1372 = vpack.c.bf16 %v1270, %v1270
      %v1373 = vpack.c.bf16 %v1272, %v1272
      %v1374 = vpack.c.bf16 %v1274, %v1274
      %v1375 = vpack.c.bf16 %v1276, %v1276
      %v1376 = vpack.c.bf16 %v1278, %v1278
      %v1377 = vpack.c.bf16 %v1280, %v1280
      %v1378 = vpack.c.bf16 %v1282, %v1282
      %v1379 = vpack.c.bf16 %v1284, %v1284
      %v1380 = vpack.c.bf16 %v1286, %v1286
      %v1381 = vpack.c.bf16 %v1288, %v1288
      %v1382 = vpack.c.bf16 %v1290, %v1290
      %v1383 = vpack.c.bf16 %v1292, %v1292
      %v1384 = vpack.c.bf16 %v1294, %v1294
      %v1385 = vpack.c.bf16 %v1296, %v1296
      %v1386 = vpack.c.bf16 %v1298, %v1298
      %v1387 = vpack.c.bf16 %v1300, %v1300
      %v1388 = vpack.c.bf16 %v1302, %v1302
      %v1389 = vpack.c.bf16 %v1304, %v1304
      %v1390 = vpack.c.bf16 %v1306, %v1306
      %v1391 = vpack.c.bf16 %v1308, %v1308
      %v1392 = vpack.c.bf16 %v1310, %v1310
      %v1393 = vpack.c.bf16 %v1312, %v1312
      %v1394 = vpack.c.bf16 %v1314, %v1314
      %v1395 = vpack.c.bf16 %v1316, %v1316
      %v1396 = vpack.c.bf16 %v1318, %v1318
      %v1397 = vpack.c.bf16 %v1320, %v1320
      %v1398 = vpack.c.bf16 %v1322, %v1322
      %v1399 = vpack.c.bf16 %v1324, %v1324
      %v1400 = vpack.c.bf16 %v1326, %v1326
      %v1401 = vpack.c.bf16 %v1328, %v1328
      %v1402 = vpack.c.bf16 %v1330, %v1330
      %v1403 = vpack.c.bf16 %v1332, %v1332
      %v1404 = vpack.c.bf16 %v1334, %v1334
      %v1405 = vpack.c.bf16 %v1336, %v1336
      %v1406 = vpack.c.bf16 %v1338, %v1338
      %v1407 = vpack.c.bf16 %v1340, %v1340
      %v1408 = vpack.c.bf16 %v1342, %v1342
      %v1409 = vpack.c.bf16 %v1344, %v1344
      %v1410 = vpack.c.bf16 %v1346, %v1346
      %v1411 = vpack.c.bf16 %v340, %v340
      %v1412 = vpack.c.bf16 1.0, 1.0
      %v1413 = vpack.c.bf16 %v347, %v347
      %v1414 = vpack.c.bf16 %v355, %v355
      %v1415 = vpack.c.bf16 %v362, %v362
      %v1416 = vpack.c.bf16 %v370, %v370
      %v1417 = vpack.c.bf16 %v377, %v377
      %v1418 = vpack.c.bf16 %v385, %v385
      %v1419 = vpack.c.bf16 %v392, %v392
      %v1422 = vunpack.c.l.b16 %v1411
      %v1423 = vunpack.c.l.b16 %v1412
      %v1424 = vpack.c.b16 %v1423, %v1422
      %v1433 = vunpack.c.l.b16 %v1347
      %v1434 = vunpack.c.l.b16 %v1348
      %v1435 = vunpack.c.l.b16 %v1349
      %v1436 = vunpack.c.l.b16 %v1350
      %v1437 = vunpack.c.l.b16 %v1351
      %v1438 = vunpack.c.l.b16 %v1352
      %v1439 = vunpack.c.l.b16 %v1353
      %v1440 = vunpack.c.l.b16 %v1354
      %v1441 = vpack.c.b16 %v1434, %v1433
      %v1442 = vpack.c.b16 %v1436, %v1435
      %v1443 = vpack.c.b16 %v1438, %v1437
      %v1444 = vpack.c.b16 %v1440, %v1439
      %v1446 = vsel %vm288, %v1424, 0
      %v1449 = vsel %vm288, %v1441, 0
      %v1452 = vsel %vm288, %v1442, 0
      %v1455 = vsel %vm288, %v1443, 0
      %v1458 = vsel %vm288, %v1444, 0
      %1460 = vmatpush.bf16.xpose.msra.mxu0 0
      %1461 = vmatpush.bf16.xpose.msra.mxu0 0
      %1462 = vmatpush.bf16.xpose.msra.mxu0 0
      %1463 = vmatpush.bf16.xpose.msra.mxu0 0
      %1464 = vmatpush.bf16.xpose.msra.mxu0 %v1458
      %1465 = vmatpush.bf16.xpose.msra.mxu0 %v1455
      %1466 = vmatpush.bf16.xpose.msra.mxu0 %v1452
      %1467 = vmatpush.bf16.xpose.msra.mxu0 %v1449
      %1468 = vmatmul.bf16.gmra.mxu0 %v1446
      %v1469 = vpop.f32.mrf.mxu0
      %v1470 = vadd.f32 0.0, %v1469
      %v1471 = vpop.f32.mrf.mxu0
      %v1472 = vadd.f32 0.0, %v1471
      %1473 = vdwg.mxu0
      %v1475 = vunpack.c.l.b16 %v1413
      %v1476 = vpack.c.b16 %v1423, %v1475
      %v1485 = vunpack.c.l.b16 %v1355
      %v1486 = vunpack.c.l.b16 %v1356
      %v1487 = vunpack.c.l.b16 %v1357
      %v1488 = vunpack.c.l.b16 %v1358
      %v1489 = vunpack.c.l.b16 %v1359
      %v1490 = vunpack.c.l.b16 %v1360
      %v1491 = vunpack.c.l.b16 %v1361
      %v1492 = vunpack.c.l.b16 %v1362
      %v1493 = vpack.c.b16 %v1486, %v1485
      %v1494 = vpack.c.b16 %v1488, %v1487
      %v1495 = vpack.c.b16 %v1490, %v1489
      %v1496 = vpack.c.b16 %v1492, %v1491
      %v1498 = vsel %vm288, %v1476, 0
      %v1501 = vsel %vm288, %v1493, 0
      %v1504 = vsel %vm288, %v1494, 0
      %v1507 = vsel %vm288, %v1495, 0
      %v1510 = vsel %vm288, %v1496, 0
      %1512 = vmatpush.bf16.xpose.msra.mxu0 0
      %1513 = vmatpush.bf16.xpose.msra.mxu0 0
      %1514 = vmatpush.bf16.xpose.msra.mxu0 0
      %1515 = vmatpush.bf16.xpose.msra.mxu0 0
      %1516 = vmatpush.bf16.xpose.msra.mxu0 %v1510
      %1517 = vmatpush.bf16.xpose.msra.mxu0 %v1507
      %1518 = vmatpush.bf16.xpose.msra.mxu0 %v1504
      %1519 = vmatpush.bf16.xpose.msra.mxu0 %v1501
      %1520 = vmatmul.bf16.gmra.mxu0 %v1498
      %v1521 = vpop.f32.mrf.mxu0
      %v1522 = vadd.f32 0.0, %v1521
      %v1523 = vpop.f32.mrf.mxu0
      %v1524 = vadd.f32 0.0, %v1523
      %1525 = vdwg.mxu0
      %v1527 = vunpack.c.l.b16 %v1414
      %v1528 = vpack.c.b16 %v1423, %v1527
      %v1537 = vunpack.c.l.b16 %v1363
      %v1538 = vunpack.c.l.b16 %v1364
      %v1539 = vunpack.c.l.b16 %v1365
      %v1540 = vunpack.c.l.b16 %v1366
      %v1541 = vunpack.c.l.b16 %v1367
      %v1542 = vunpack.c.l.b16 %v1368
      %v1543 = vunpack.c.l.b16 %v1369
      %v1544 = vunpack.c.l.b16 %v1370
      %v1545 = vpack.c.b16 %v1538, %v1537
      %v1546 = vpack.c.b16 %v1540, %v1539
      %v1547 = vpack.c.b16 %v1542, %v1541
      %v1548 = vpack.c.b16 %v1544, %v1543
      %v1550 = vsel %vm288, %v1528, 0
      %v1553 = vsel %vm288, %v1545, 0
      %v1556 = vsel %vm288, %v1546, 0
      %v1559 = vsel %vm288, %v1547, 0
      %v1562 = vsel %vm288, %v1548, 0
      %1564 = vmatpush.bf16.xpose.msra.mxu0 0
      %1565 = vmatpush.bf16.xpose.msra.mxu0 0
      %1566 = vmatpush.bf16.xpose.msra.mxu0 0
      %1567 = vmatpush.bf16.xpose.msra.mxu0 0
      %1568 = vmatpush.bf16.xpose.msra.mxu0 %v1562
      %1569 = vmatpush.bf16.xpose.msra.mxu0 %v1559
      %1570 = vmatpush.bf16.xpose.msra.mxu0 %v1556
      %1571 = vmatpush.bf16.xpose.msra.mxu0 %v1553
      %1572 = vmatmul.bf16.gmra.mxu0 %v1550
      %v1573 = vpop.f32.mrf.mxu0
      %v1574 = vadd.f32 0.0, %v1573
      %v1575 = vpop.f32.mrf.mxu0
      %v1576 = vadd.f32 0.0, %v1575
      %1577 = vdwg.mxu0
      %v1579 = vunpack.c.l.b16 %v1415
      %v1580 = vpack.c.b16 %v1423, %v1579
      %v1589 = vunpack.c.l.b16 %v1371
      %v1590 = vunpack.c.l.b16 %v1372
      %v1591 = vunpack.c.l.b16 %v1373
      %v1592 = vunpack.c.l.b16 %v1374
      %v1593 = vunpack.c.l.b16 %v1375
      %v1594 = vunpack.c.l.b16 %v1376
      %v1595 = vunpack.c.l.b16 %v1377
      %v1596 = vunpack.c.l.b16 %v1378
      %v1597 = vpack.c.b16 %v1590, %v1589
      %v1598 = vpack.c.b16 %v1592, %v1591
      %v1599 = vpack.c.b16 %v1594, %v1593
      %v1600 = vpack.c.b16 %v1596, %v1595
      %v1602 = vsel %vm288, %v1580, 0
      %v1605 = vsel %vm288, %v1597, 0
      %v1608 = vsel %vm288, %v1598, 0
      %v1611 = vsel %vm288, %v1599, 0
      %v1614 = vsel %vm288, %v1600, 0
      %1616 = vmatpush.bf16.xpose.msra.mxu0 0
      %1617 = vmatpush.bf16.xpose.msra.mxu0 0
      %1618 = vmatpush.bf16.xpose.msra.mxu0 0
      %1619 = vmatpush.bf16.xpose.msra.mxu0 0
      %1620 = vmatpush.bf16.xpose.msra.mxu0 %v1614
      %1621 = vmatpush.bf16.xpose.msra.mxu0 %v1611
      %1622 = vmatpush.bf16.xpose.msra.mxu0 %v1608
      %1623 = vmatpush.bf16.xpose.msra.mxu0 %v1605
      %1624 = vmatmul.bf16.gmra.mxu0 %v1602
      %v1625 = vpop.f32.mrf.mxu0
      %v1626 = vadd.f32 0.0, %v1625
      %v1627 = vpop.f32.mrf.mxu0
      %v1628 = vadd.f32 0.0, %v1627
      %1629 = vdwg.mxu0
      %v1631 = vunpack.c.l.b16 %v1416
      %v1632 = vpack.c.b16 %v1423, %v1631
      %v1641 = vunpack.c.l.b16 %v1379
      %v1642 = vunpack.c.l.b16 %v1380
      %v1643 = vunpack.c.l.b16 %v1381
      %v1644 = vunpack.c.l.b16 %v1382
      %v1645 = vunpack.c.l.b16 %v1383
      %v1646 = vunpack.c.l.b16 %v1384
      %v1647 = vunpack.c.l.b16 %v1385
      %v1648 = vunpack.c.l.b16 %v1386
      %v1649 = vpack.c.b16 %v1642, %v1641
      %v1650 = vpack.c.b16 %v1644, %v1643
      %v1651 = vpack.c.b16 %v1646, %v1645
      %v1652 = vpack.c.b16 %v1648, %v1647
      %v1654 = vsel %vm288, %v1632, 0
      %v1657 = vsel %vm288, %v1649, 0
      %v1660 = vsel %vm288, %v1650, 0
      %v1663 = vsel %vm288, %v1651, 0
      %v1666 = vsel %vm288, %v1652, 0
      %1668 = vmatpush.bf16.xpose.msra.mxu0 0
      %1669 = vmatpush.bf16.xpose.msra.mxu0 0
      %1670 = vmatpush.bf16.xpose.msra.mxu0 0
      %1671 = vmatpush.bf16.xpose.msra.mxu0 0
      %1672 = vmatpush.bf16.xpose.msra.mxu0 %v1666
      %1673 = vmatpush.bf16.xpose.msra.mxu0 %v1663
      %1674 = vmatpush.bf16.xpose.msra.mxu0 %v1660
      %1675 = vmatpush.bf16.xpose.msra.mxu0 %v1657
      %1676 = vmatmul.bf16.gmra.mxu0 %v1654
      %v1677 = vpop.f32.mrf.mxu0
      %v1678 = vadd.f32 0.0, %v1677
      %v1679 = vpop.f32.mrf.mxu0
      %v1680 = vadd.f32 0.0, %v1679
      %1681 = vdwg.mxu0
      %v1683 = vunpack.c.l.b16 %v1417
      %v1684 = vpack.c.b16 %v1423, %v1683
      %v1693 = vunpack.c.l.b16 %v1387
      %v1694 = vunpack.c.l.b16 %v1388
      %v1695 = vunpack.c.l.b16 %v1389
      %v1696 = vunpack.c.l.b16 %v1390
      %v1697 = vunpack.c.l.b16 %v1391
      %v1698 = vunpack.c.l.b16 %v1392
      %v1699 = vunpack.c.l.b16 %v1393
      %v1700 = vunpack.c.l.b16 %v1394
      %v1701 = vpack.c.b16 %v1694, %v1693
      %v1702 = vpack.c.b16 %v1696, %v1695
      %v1703 = vpack.c.b16 %v1698, %v1697
      %v1704 = vpack.c.b16 %v1700, %v1699
      %v1706 = vsel %vm288, %v1684, 0
      %v1709 = vsel %vm288, %v1701, 0
      %v1712 = vsel %vm288, %v1702, 0
      %v1715 = vsel %vm288, %v1703, 0
      %v1718 = vsel %vm288, %v1704, 0
      %1720 = vmatpush.bf16.xpose.msra.mxu0 0
      %1721 = vmatpush.bf16.xpose.msra.mxu0 0
      %1722 = vmatpush.bf16.xpose.msra.mxu0 0
      %1723 = vmatpush.bf16.xpose.msra.mxu0 0
      %1724 = vmatpush.bf16.xpose.msra.mxu0 %v1718
      %1725 = vmatpush.bf16.xpose.msra.mxu0 %v1715
      %1726 = vmatpush.bf16.xpose.msra.mxu0 %v1712
      %1727 = vmatpush.bf16.xpose.msra.mxu0 %v1709
      %1728 = vmatmul.bf16.gmra.mxu0 %v1706
      %v1729 = vpop.f32.mrf.mxu0
      %v1730 = vadd.f32 0.0, %v1729
      %v1731 = vpop.f32.mrf.mxu0
      %v1732 = vadd.f32 0.0, %v1731
      %1733 = vdwg.mxu0
      %v1735 = vunpack.c.l.b16 %v1418
      %v1736 = vpack.c.b16 %v1423, %v1735
      %v1745 = vunpack.c.l.b16 %v1395
      %v1746 = vunpack.c.l.b16 %v1396
      %v1747 = vunpack.c.l.b16 %v1397
      %v1748 = vunpack.c.l.b16 %v1398
      %v1749 = vunpack.c.l.b16 %v1399
      %v1750 = vunpack.c.l.b16 %v1400
      %v1751 = vunpack.c.l.b16 %v1401
      %v1752 = vunpack.c.l.b16 %v1402
      %v1753 = vpack.c.b16 %v1746, %v1745
      %v1754 = vpack.c.b16 %v1748, %v1747
      %v1755 = vpack.c.b16 %v1750, %v1749
      %v1756 = vpack.c.b16 %v1752, %v1751
      %v1758 = vsel %vm288, %v1736, 0
      %v1761 = vsel %vm288, %v1753, 0
      %v1764 = vsel %vm288, %v1754, 0
      %v1767 = vsel %vm288, %v1755, 0
      %v1770 = vsel %vm288, %v1756, 0
      %1772 = vmatpush.bf16.xpose.msra.mxu0 0
      %1773 = vmatpush.bf16.xpose.msra.mxu0 0
      %1774 = vmatpush.bf16.xpose.msra.mxu0 0
      %1775 = vmatpush.bf16.xpose.msra.mxu0 0
      %1776 = vmatpush.bf16.xpose.msra.mxu0 %v1770
      %1777 = vmatpush.bf16.xpose.msra.mxu0 %v1767
      %1778 = vmatpush.bf16.xpose.msra.mxu0 %v1764
      %1779 = vmatpush.bf16.xpose.msra.mxu0 %v1761
      %1780 = vmatmul.bf16.gmra.mxu0 %v1758
      %v1781 = vpop.f32.mrf.mxu0
      %v1782 = vadd.f32 0.0, %v1781
      %v1783 = vpop.f32.mrf.mxu0
      %v1784 = vadd.f32 0.0, %v1783
      %1785 = vdwg.mxu0
      %v1787 = vunpack.c.l.b16 %v1419
      %v1788 = vpack.c.b16 %v1423, %v1787
      %v1797 = vunpack.c.l.b16 %v1403
      %v1798 = vunpack.c.l.b16 %v1404
      %v1799 = vunpack.c.l.b16 %v1405
      %v1800 = vunpack.c.l.b16 %v1406
      %v1801 = vunpack.c.l.b16 %v1407
      %v1802 = vunpack.c.l.b16 %v1408
      %v1803 = vunpack.c.l.b16 %v1409
      %v1804 = vunpack.c.l.b16 %v1410
      %v1805 = vpack.c.b16 %v1798, %v1797
      %v1806 = vpack.c.b16 %v1800, %v1799
      %v1807 = vpack.c.b16 %v1802, %v1801
      %v1808 = vpack.c.b16 %v1804, %v1803
      %v1810 = vsel %vm288, %v1788, 0
      %v1813 = vsel %vm288, %v1805, 0
      %v1816 = vsel %vm288, %v1806, 0
      %v1819 = vsel %vm288, %v1807, 0
      %v1822 = vsel %vm288, %v1808, 0
      %1824 = vmatpush.bf16.xpose.msra.mxu0 0
      %1825 = vmatpush.bf16.xpose.msra.mxu0 0
      %1826 = vmatpush.bf16.xpose.msra.mxu0 0
      %1827 = vmatpush.bf16.xpose.msra.mxu0 0
      %1828 = vmatpush.bf16.xpose.msra.mxu0 %v1822
      %1829 = vmatpush.bf16.xpose.msra.mxu0 %v1819
      %1830 = vmatpush.bf16.xpose.msra.mxu0 %v1816
      %1831 = vmatpush.bf16.xpose.msra.mxu0 %v1813
      %1832 = vmatmul.bf16.gmra.mxu0 %v1810
      %v1833 = vpop.f32.mrf.mxu0
      %v1834 = vadd.f32 0.0, %v1833
      %v1835 = vpop.f32.mrf.mxu0
      %v1836 = vadd.f32 0.0, %v1835
      %1837 = vdwg.mxu0
      %v1838 = vrcp.pop %v1472
      %v1839 = vrcp.pop %v1524
      %v1840 = vrcp.pop %v1576
      %v1841 = vrcp.pop %v1628
      %v1842 = vrcp.pop %v1680
      %v1843 = vrcp.pop %v1732
      %v1844 = vrcp.pop %v1784
      %v1845 = vrcp.pop %v1836
      %v1846 = vperm.slane %v1838, 0
      %v1847 = vperm.slane %v1839, 0
      %v1848 = vperm.slane %v1840, 0
      %v1849 = vperm.slane %v1841, 0
      %v1850 = vperm.slane %v1842, 0
      %v1851 = vperm.slane %v1843, 0
      %v1852 = vperm.slane %v1844, 0
      %v1853 = vperm.slane %v1845, 0
      %v1854 = vmul.f32 %v1470, %v1846
      %v1855 = vmul.f32 %v1522, %v1847
      %v1856 = vmul.f32 %v1574, %v1848
      %v1857 = vmul.f32 %v1626, %v1849
      %v1858 = vmul.f32 %v1678, %v1850
      %v1859 = vmul.f32 %v1730, %v1851
      %v1860 = vmul.f32 %v1782, %v1852
      %v1861 = vmul.f32 %v1834, %v1853
      %1862 = vst.msk [vmem:[%s170] sm:$0xff] %vm288, %v1854
      %1863 = vst.msk [vmem:[%s170 + $0x8] sm:$0xff] %vm288, %v1855
      %1864 = vst.msk [vmem:[%s170 + $0x10] sm:$0xff] %vm288, %v1856
      %1865 = vst.msk [vmem:[%s170 + $0x18] sm:$0xff] %vm288, %v1857
      %1866 = vst.msk [vmem:[%s170 + $0x20] sm:$0xff] %vm288, %v1858
      %1867 = vst.msk [vmem:[%s170 + $0x28] sm:$0xff] %vm288, %v1859
      %1868 = vst.msk [vmem:[%s170 + $0x30] sm:$0xff] %vm288, %v1860
      %1869 = vst.msk [vmem:[%s170 + $0x38] sm:$0xff] %vm288, %v1861
      %p1870 = scmp.lt.s32.totalorder %s14, 1
      %s1871 = scalar_select %p1870, %s14, 1
      %s1872 = smul.addr %s1871, 8
      %s1873 = smul.addr %s1872, 8
      %s1874 = scalar_lea.vmem %s3, %s1873
      // Predicated region
      $region33: #{mhsa3d_forward.1} parent=31 // pred_check
        %p1875 = pneg %p100
      $region34: #{mhsa3d_forward.1} parent=31 // pred_check_branch
        %1877 = sbr.rel (%p1875) target = $region36
      $region35: #{mhsa3d_forward.1} parent=31 // pred_region
        _
      $region36: #{mhsa3d_forward.1} parent=31 // pred_fallthru
        _
    $region32: #{mhsa3d_forward.1} parent=5 // pred_fallthru
      _
    %p1878 = scmp.le.s32.totalorder 2, %s9
    // Predicated region
    $region37: #{mhsa3d_forward.1} parent=5 // pred_check
      %p1879 = pneg %p1878
    $region38: #{mhsa3d_forward.1} parent=5 // pred_check_branch
      %1881 = sbr.rel (%p1879) target = $region40
    $region39: #{mhsa3d_forward.1} parent=5 // pred_region
      %s1882 = ssub.s32 %s9, 2
      // Predicated region
      $region41: #{mhsa3d_forward.1} parent=39 // pred_check
        %p1883 = pneg %p106
      $region42: #{mhsa3d_forward.1} parent=39 // pred_check_branch
        %1885 = sbr.rel (%p1883) target = $region44
      $region43: #{mhsa3d_forward.1} parent=39 // pred_region
        %p1886 = scmp.lt.s32.totalorder %s15, 1
        %s1887 = scalar_select %p1886, %s15, 1
        %s1888 = smul.addr %s1887, 8
        %s1889 = smul.addr %s1888, 8
        %s1890 = scalar_lea.vmem %s3, %s1889
      $region44: #{mhsa3d_forward.1} parent=39 // pred_fallthru
        _
    $region40: #{mhsa3d_forward.1} parent=5 // pred_fallthru
      _
  $region6: #{mhsa3d_forward.1} parent=0 // loop_footer
    %s13 = sadd.s32 1, %s9
  $region7: #{mhsa3d_forward.1} parent=0 // loop_footer_branch
    %8 = sbr.rel target = $region3
  $region8: #{mhsa3d_forward.1} parent=0 // loop_exit
    _

</llo_original>
